<compile_context>
chip_gen: v6e
topology: v6e:2x2x1
jax: 0.10.0
libtpu: 0.0.40
codegen_flags: <defaults>
</compile_context>

<pallas_src>
import functools
import math

import jax
import jax.numpy as jnp
from jax import lax
from jax.experimental import pallas as pl
from jax.experimental.pallas import tpu as pltpu

LN_EPS = 1e-5
INV_SQRT2 = 1.0 / math.sqrt(2.0)


def _round_up(x, m):
    return (x + m - 1) // m * m


# ----------------------------- in-kernel math ------------------------------ #
def _layernorm(x, gamma, beta):
    # Two independent cross-lane reductions (mean(x), mean(x*x)) instead of the
    # serial mean -> (x-mu)^2 -> mean chain.  Slightly less numerically stable
    # in f32 but fine at LayerNorm scale.
    mu = jnp.mean(x, axis=-1, keepdims=True)
    ms = jnp.mean(x * x, axis=-1, keepdims=True)
    var = ms - mu * mu
    return (x - mu) * lax.rsqrt(var + LN_EPS) * gamma + beta


def _gelu_exact(x):
    # F.gelu default = exact erf-based GELU.
    return 0.5 * x * (1.0 + lax.erf(x * INV_SQRT2))


def _softmax_lastdim(s):
    # Exact softmax (parity with torch); the divide is essentially free here.
    s = s - jnp.max(s, axis=-1, keepdims=True)
    e = jnp.exp(s)
    return e / jnp.sum(e, axis=-1, keepdims=True)


# --------------------------- fused forward kernel -------------------------- #
def make_fused_forward_kernel(num_layers, num_heads, dim_head, dim_seq, dim_mlp):
    inner = num_heads * dim_head
    pad_inner = _round_up(inner, 8)
    r1 = _round_up(dim_seq, 8)     # rows used by to_trans_w in the globals slab
    r2 = _round_up(dim_head, 8)    # rows used by to_seq_w in the globals slab

    def kernel(img_ref, glob_ref, lsm_ref, wqkv_ref, wproj_ref, o_ref):
        # ---- globals slab layout ----
        #   [0        : dim_seq )      to_trans_w   (dim_seq, dim_head)
        #   [r1       : r1+dim_head)   to_seq_w     (dim_head, dim_seq)
        #   [r1+r2    : r1+r2+3)       folded to_trans bias (cls+pos already applied)
        #   [r1+r2+3  : r1+r2+4)       to_seq bias
        ttw = glob_ref[0:dim_seq, 0:dim_head]
        tsw = glob_ref[r1:r1 + dim_head, 0:dim_seq]
        tt_bias = glob_ref[r1 + r2:r1 + r2 + 3, 0:dim_head]
        tsb = glob_ref[r1 + r2 + 3:r1 + r2 + 4, 0:dim_seq]

        # ---- tokens + to_trans:  x = [0; img] @ Wtt + (cls_pe @ Wtt + btt) ----
        x = jnp.dot(img_ref[...], ttw, preferred_element_type=jnp.float32) + tt_bias

        # ---- encoder stack, statically unrolled ----
        for l in range(num_layers):
            lsm = lsm_ref[l]                     # (8 + dim_head, dim_mlp)
            g_a = lsm[0:1, 0:dim_head]
            b_a = lsm[1:2, 0:dim_head]
            g_m = lsm[2:3, 0:dim_head]
            b_m = lsm[3:4, 0:dim_head]
            bo = lsm[4:5, 0:dim_head]
            b2 = lsm[5:6, 0:dim_head]
            b1 = lsm[6:7, :]                     # (1, dim_mlp)
            w1 = lsm[8:8 + dim_head, :]          # (dim_head, dim_mlp)

            wqkv = wqkv_ref[l]                   # (dim_head, 3*inner), Q pre-scaled
            wproj = wproj_ref[l]                 # (pad_inner + dim_mlp, dim_head)
            wo = wproj[0:inner, :]               # (inner, dim_head)
            w2 = wproj[pad_inner:pad_inner + dim_mlp, :]   # (dim_mlp, dim_head)

            # --- MSA block: x = to_out(MSA(LN(x))) + x ---
            xn = _layernorm(x, g_a, b_a)
            qkv = jnp.dot(xn, wqkv, preferred_element_type=jnp.float32)  # (3, 3*inner)

            heads = []
            for h in range(num_heads):           # independent per-head chains
                lo = h * dim_head
                q = qkv[:, lo:lo + dim_head]
                k = qkv[:, inner + lo:inner + lo + dim_head]
                v = qkv[:, 2 * inner + lo:2 * inner + lo + dim_head]
                s = jnp.dot(q, k.T, preferred_element_type=jnp.float32)  # scale folded in
                p = _softmax_lastdim(s)
                heads.append(jnp.dot(p, v, preferred_element_type=jnp.float32))
            ctx = jnp.concatenate(heads, axis=-1)          # (3, inner) — one vreg
            x = jnp.dot(ctx, wo, preferred_element_type=jnp.float32) + bo + x

            # --- MLP block: x = W2(GELU(W1(LN(x)))) + x ---
            xm = _layernorm(x, g_m, b_m)
            hdn = jnp.dot(xm, w1, preferred_element_type=jnp.float32) + b1
            hdn = _gelu_exact(hdn)
            x = jnp.dot(hdn, w2, preferred_element_type=jnp.float32) + b2 + x

        # ---- to_seq ----
        o_ref[...] = jnp.dot(x, tsw, preferred_element_type=jnp.float32) + tsb

    return kernel


# --------------------------- parameter init / pack ------------------------- #
def _linear_init(key, fan_in, fan_out, bias=True):
    k_w, k_b = jax.random.split(key)
    bound = 1.0 / math.sqrt(fan_in)
    w = jax.random.uniform(k_w, (fan_in, fan_out), jnp.float32, -bound, bound)
    b = (jax.random.uniform(k_b, (1, fan_out), jnp.float32, -bound, bound)
         if bias else None)
    return w, b


def init_params(key, dim_seq, num_heads, dim_head, num_encoders):
    """Raw parameters mirroring the torch module (pre-packing)."""
    inner = num_heads * dim_head
    dim_mlp = dim_seq * 2
    keys = jax.random.split(key, 3 + num_encoders)

    raw = {
        "cls_token": jnp.zeros((1, 1, dim_seq), jnp.float32),
        "order_embedding": jax.random.normal(keys[0], (1, 3, dim_seq), jnp.float32),
    }
    raw["to_trans_w"], raw["to_trans_b"] = _linear_init(keys[1], dim_seq, dim_head)
    raw["to_seq_w"], raw["to_seq_b"] = _linear_init(keys[2], dim_head, dim_seq)

    wqkv_l, wo_l, bo_l, w1_l, b1_l, w2_l, b2_l = [], [], [], [], [], [], []
    for i in range(num_encoders):
        lk = jax.random.split(keys[3 + i], 4)
        wqkv, _ = _linear_init(lk[0], dim_head, 3 * inner, bias=False)
        wo, bo = _linear_init(lk[1], inner, dim_head)
        w1, b1 = _linear_init(lk[2], dim_head, dim_mlp)
        w2, b2 = _linear_init(lk[3], dim_mlp, dim_head)
        wqkv_l.append(wqkv); wo_l.append(wo); bo_l.append(bo)
        w1_l.append(w1); b1_l.append(b1); w2_l.append(w2); b2_l.append(b2)

    L = num_encoders
    raw["ln1_g"] = jnp.ones((L, dim_head), jnp.float32)
    raw["ln1_b"] = jnp.zeros((L, dim_head), jnp.float32)
    raw["ln2_g"] = jnp.ones((L, dim_head), jnp.float32)
    raw["ln2_b"] = jnp.zeros((L, dim_head), jnp.float32)
    raw["wqkv"] = jnp.stack(wqkv_l)       # (L, dim_head, 3*inner)
    raw["wo"] = jnp.stack(wo_l)           # (L, inner, dim_head)
    raw["bo"] = jnp.stack(bo_l)           # (L, 1, dim_head)
    raw["w1"] = jnp.stack(w1_l)           # (L, dim_head, dim_mlp)
    raw["b1"] = jnp.stack(b1_l)           # (L, 1, dim_mlp)
    raw["w2"] = jnp.stack(w2_l)           # (L, dim_mlp, dim_head)
    raw["b2"] = jnp.stack(b2_l)           # (L, 1, dim_head)
    return raw


def pack_params(raw, *, num_heads, dim_head):
    """One-time packing of raw params into the 4 kernel slabs."""
    dim_seq = raw["to_trans_w"].shape[0]
    L, _, dim_mlp = raw["w1"].shape
    inner = num_heads * dim_head
    pad_inner = _round_up(inner, 8)
    r1 = _round_up(dim_seq, 8)
    r2 = _round_up(dim_head, 8)
    wg = max(dim_seq, dim_head)

    # Fold cls_token + order_embedding through to_trans:
    #   (cat(cls, img) + pe) @ W + b  ==  [0; img] @ W  +  (cls_pe @ W + b)
    cls_pe = raw["order_embedding"][0].at[0:1].add(raw["cls_token"][0])      # (3, dim_seq)
    tt_bias = cls_pe @ raw["to_trans_w"] + raw["to_trans_b"]                 # (3, dim_head)

    glob = jnp.zeros((r1 + r2 + 4, wg), jnp.float32)
    glob = glob.at[0:dim_seq, 0:dim_head].set(raw["to_trans_w"])
    glob = glob.at[r1:r1 + dim_head, 0:dim_seq].set(raw["to_seq_w"])
    glob = glob.at[r1 + r2:r1 + r2 + 3, 0:dim_head].set(tt_bias)
    glob = glob.at[r1 + r2 + 3, 0:dim_seq].set(raw["to_seq_b"][0])

    # Per-layer small slab: 8 packed vector rows + W1, lane width dim_mlp.
    vec = jnp.zeros((L, 8, dim_mlp), jnp.float32)
    vec = vec.at[:, 0, 0:dim_head].set(raw["ln1_g"])
    vec = vec.at[:, 1, 0:dim_head].set(raw["ln1_b"])
    vec = vec.at[:, 2, 0:dim_head].set(raw["ln2_g"])
    vec = vec.at[:, 3, 0:dim_head].set(raw["ln2_b"])
    vec = vec.at[:, 4, 0:dim_head].set(raw["bo"][:, 0, :])
    vec = vec.at[:, 5, 0:dim_head].set(raw["b2"][:, 0, :])
    vec = vec.at[:, 6, :].set(raw["b1"][:, 0, :])
    lsm = jnp.concatenate([vec, raw["w1"]], axis=1)       # (L, 8 + dim_head, dim_mlp)

    # Attention scale folded into the Q columns of W_qkv.
    scale = dim_head ** (-0.5)
    wqkv = raw["wqkv"].at[:, :, 0:inner].multiply(scale)

    # W_o and W2 sublane-stacked (8-aligned offsets -> free in-kernel slices).
    wproj = jnp.zeros((L, pad_inner + dim_mlp, dim_head), jnp.float32)
    wproj = wproj.at[:, 0:inner, :].set(raw["wo"])
    wproj = wproj.at[:, pad_inner:pad_inner + dim_mlp, :].set(raw["w2"])

    return {"glob": glob, "lsm": lsm, "wqkv": wqkv, "wproj": wproj}


# ------------------------------ forward ------------------------------------ #
def transformer_structure_forward(packed, img):
    # img: (1, 2, dim_seq)  ->  output: (1, 3, dim_seq)
    assert img.ndim == 3 and img.shape[0] == 1 and img.shape[1] == 2, (
        "Transformer_Structure.forward only supports batch=1 with 2 image tokens")
    dim_seq = img.shape[2]
    L, dim_head, triple_inner = packed["wqkv"].shape
    inner = triple_inner // 3
    num_heads = inner // dim_head
    dim_mlp = packed["lsm"].shape[2]

    # Zero-pad the image tokens to 3 rows (cls/pos handling is folded into the
    # packed to_trans bias), so token construction is just one matmul + add.
    img_pad = jnp.concatenate(
        [jnp.zeros((1, dim_seq), jnp.float32), img[0].astype(jnp.float32)], axis=0)

    kernel = make_fused_forward_kernel(L, num_heads, dim_head, dim_seq, dim_mlp)
    vmem = pl.BlockSpec(memory_space=pltpu.MemorySpace.VMEM)
    out = pl.pallas_call(
        kernel,
        out_shape=jax.ShapeDtypeStruct((3, dim_seq), jnp.float32),
        in_specs=[vmem] * 5,
        out_specs=vmem,
    )(img_pad, packed["glob"], packed["lsm"], packed["wqkv"], packed["wproj"])
    return out[None]                                       # (1, 3, dim_seq)


# --------------------------- pure-JAX reference ----------------------------- #
def reference_forward(raw, img, *, num_heads, dim_head):
    inner = num_heads * dim_head
    scale = dim_head ** (-0.5)

    def ln(x, g, b):
        mu = x.mean(-1, keepdims=True)
        var = ((x - mu) ** 2).mean(-1, keepdims=True)
        return (x - mu) / jnp.sqrt(var + LN_EPS) * g + b

    x = jnp.concatenate([raw["cls_token"], img], axis=1) + raw["order_embedding"]
    x = x[0] @ raw["to_trans_w"] + raw["to_trans_b"]
    for l in range(raw["wqkv"].shape[0]):
        xn = ln(x, raw["ln1_g"][l], raw["ln1_b"][l])
        qkv = xn @ raw["wqkv"][l]
        q, k, v = qkv[:, :inner], qkv[:, inner:2 * inner], qkv[:, 2 * inner:]
        outs = []
        for h in range(num_heads):
            sl = slice(h * dim_head, (h + 1) * dim_head)
            s = (q[:, sl] @ k[:, sl].T) * scale
            outs.append(jax.nn.softmax(s, axis=-1) @ v[:, sl])
        x = jnp.concatenate(outs, axis=-1) @ raw["wo"][l] + raw["bo"][l] + x
        xm = ln(x, raw["ln2_g"][l], raw["ln2_b"][l])
        h1 = jax.nn.gelu(xm @ raw["w1"][l] + raw["b1"][l], approximate=False)
        x = h1 @ raw["w2"][l] + raw["b2"][l] + x
    x = x @ raw["to_seq_w"] + raw["to_seq_b"]
    return x[None]


# -------------------------------- main -------------------------------------- #
if __name__ == "__main__":
    # Small shapes consistent with the module (batch must be 1, img seq length
    # must be 2 so cat(cls, img) has length 3).
    DIM_SEQ = 32
    NUM_HEADS = 3
    DIM_HEAD = 16
    NUM_ENCODERS = 2

    key = jax.random.PRNGKey(0)
    k_params, k_img = jax.random.split(key)
    raw = init_params(k_params, DIM_SEQ, NUM_HEADS, DIM_HEAD, NUM_ENCODERS)
    packed = pack_params(raw, num_heads=NUM_HEADS, dim_head=DIM_HEAD)
    img = jax.random.normal(k_img, (1, 2, DIM_SEQ), jnp.float32)

    fwd = jax.jit(transformer_structure_forward)
    out = jax.block_until_ready(fwd(packed, img))
    assert out.shape == (1, 3, DIM_SEQ)

    ref = reference_forward(raw, img, num_heads=NUM_HEADS, dim_head=DIM_HEAD)
    max_err = float(jnp.max(jnp.abs(out - ref)))
    assert max_err < 2e-3, f"kernel/reference mismatch: max abs err {max_err}"

    print("KERNEL_OK")
</pallas_src>

<mosaic_0001>
module attributes {stable_mosaic.version = 11 : i64} {
  func.func @kernel(%arg0: memref<3x32xf32, #tpu.memory_space<vmem>>, %arg1: memref<52x32xf32, #tpu.memory_space<vmem>>, %arg2: memref<2x24x64xf32, #tpu.memory_space<vmem>>, %arg3: memref<2x16x144xf32, #tpu.memory_space<vmem>>, %arg4: memref<2x112x16xf32, #tpu.memory_space<vmem>>, %arg5: memref<3x32xf32, #tpu.memory_space<vmem>>) attributes {dimension_semantics = [], scalar_prefetch = 0 : i64, scratch_operands = 0 : i64, tpu.core_type = #tpu.core_type<tc>} {
    %c0 = arith.constant 0 : index
    %c0_0 = arith.constant 0 : index
    %0 = vector.load %arg1[%c0, %c0_0] : memref<52x32xf32, #tpu.memory_space<vmem>>, vector<32x16xf32>
    %c32 = arith.constant 32 : index
    %c0_1 = arith.constant 0 : index
    %1 = vector.load %arg1[%c32, %c0_1] : memref<52x32xf32, #tpu.memory_space<vmem>>, vector<16x32xf32>
    %c48 = arith.constant 48 : index
    %c0_2 = arith.constant 0 : index
    %2 = vector.load %arg1[%c48, %c0_2] : memref<52x32xf32, #tpu.memory_space<vmem>>, vector<3x16xf32>
    %c51 = arith.constant 51 : index
    %c0_3 = arith.constant 0 : index
    %3 = vector.load %arg1[%c51, %c0_3] : memref<52x32xf32, #tpu.memory_space<vmem>>, vector<1x32xf32>
    %c0_4 = arith.constant 0 : index
    %c0_5 = arith.constant 0 : index
    %4 = vector.load %arg0[%c0_4, %c0_5] : memref<3x32xf32, #tpu.memory_space<vmem>>, vector<3x32xf32>
    %cst = arith.constant dense<0.000000e+00> : vector<3x16xf32>
    %5 = tpu.matmul %4, %0, %cst {dimension_numbers = #tpu.dot_dimension_numbers<[1], [0], [0], [1], [0, 0, 1, 1], [], []>} : vector<3x32xf32>, vector<32x16xf32>, vector<3x16xf32> -> vector<3x16xf32>
    %6 = arith.addf %5, %2 : vector<3x16xf32>
    %c0_6 = arith.constant 0 : index
    %c0_7 = arith.constant 0 : index
    %c0_8 = arith.constant 0 : index
    %7 = vector.load %arg2[%c0_6, %c0_7, %c0_8] : memref<2x24x64xf32, #tpu.memory_space<vmem>>, vector<1x24x64xf32>
    %8 = vector.shape_cast %7 : vector<1x24x64xf32> to vector<24x64xf32>
    %9 = vector.extract_strided_slice %8 {offsets = [0, 0], sizes = [1, 16], strides = [1, 1]} : vector<24x64xf32> to vector<1x16xf32>
    %10 = vector.extract_strided_slice %8 {offsets = [1, 0], sizes = [1, 16], strides = [1, 1]} : vector<24x64xf32> to vector<1x16xf32>
    %11 = vector.extract_strided_slice %8 {offsets = [2, 0], sizes = [1, 16], strides = [1, 1]} : vector<24x64xf32> to vector<1x16xf32>
    %12 = vector.extract_strided_slice %8 {offsets = [3, 0], sizes = [1, 16], strides = [1, 1]} : vector<24x64xf32> to vector<1x16xf32>
    %13 = vector.extract_strided_slice %8 {offsets = [4, 0], sizes = [1, 16], strides = [1, 1]} : vector<24x64xf32> to vector<1x16xf32>
    %14 = vector.extract_strided_slice %8 {offsets = [5, 0], sizes = [1, 16], strides = [1, 1]} : vector<24x64xf32> to vector<1x16xf32>
    %15 = vector.extract_strided_slice %8 {offsets = [6, 0], sizes = [1, 64], strides = [1, 1]} : vector<24x64xf32> to vector<1x64xf32>
    %16 = vector.extract_strided_slice %8 {offsets = [8, 0], sizes = [16, 64], strides = [1, 1]} : vector<24x64xf32> to vector<16x64xf32>
    %c0_9 = arith.constant 0 : index
    %c0_10 = arith.constant 0 : index
    %c0_11 = arith.constant 0 : index
    %17 = vector.load %arg3[%c0_9, %c0_10, %c0_11] : memref<2x16x144xf32, #tpu.memory_space<vmem>>, vector<1x16x144xf32>
    %18 = vector.shape_cast %17 : vector<1x16x144xf32> to vector<16x144xf32>
    %c0_12 = arith.constant 0 : index
    %c0_13 = arith.constant 0 : index
    %c0_14 = arith.constant 0 : index
    %19 = vector.load %arg4[%c0_12, %c0_13, %c0_14] : memref<2x112x16xf32, #tpu.memory_space<vmem>>, vector<1x112x16xf32>
    %20 = vector.shape_cast %19 : vector<1x112x16xf32> to vector<112x16xf32>
    %21 = vector.extract_strided_slice %20 {offsets = [0, 0], sizes = [48, 16], strides = [1, 1]} : vector<112x16xf32> to vector<48x16xf32>
    %22 = vector.extract_strided_slice %20 {offsets = [48, 0], sizes = [64, 16], strides = [1, 1]} : vector<112x16xf32> to vector<64x16xf32>
    %cst_15 = arith.constant dense<0.000000e+00> : vector<3xf32>
    %23 = vector.multi_reduction <add>, %6, %cst_15 [1] : vector<3x16xf32> to vector<3xf32>
    %24 = vector.shape_cast %23 : vector<3xf32> to vector<3x1xf32>
    %cst_16 = arith.constant 1.600000e+01 : f32
    %25 = vector.broadcast %cst_16 : f32 to vector<3x1xf32>
    %26 = arith.divf %24, %25 : vector<3x1xf32>
    %27 = arith.mulf %6, %6 : vector<3x16xf32>
    %cst_17 = arith.constant dense<0.000000e+00> : vector<3xf32>
    %28 = vector.multi_reduction <add>, %27, %cst_17 [1] : vector<3x16xf32> to vector<3xf32>
    %29 = vector.shape_cast %28 : vector<3xf32> to vector<3x1xf32>
    %cst_18 = arith.constant 1.600000e+01 : f32
    %30 = vector.broadcast %cst_18 : f32 to vector<3x1xf32>
    %31 = arith.divf %29, %30 : vector<3x1xf32>
    %32 = arith.mulf %26, %26 : vector<3x1xf32>
    %33 = arith.subf %31, %32 : vector<3x1xf32>
    %34 = vector.broadcast %26 : vector<3x1xf32> to vector<3x16xf32>
    %35 = arith.subf %6, %34 : vector<3x16xf32>
    %cst_19 = arith.constant 9.99999974E-6 : f32
    %36 = vector.broadcast %cst_19 : f32 to vector<3x1xf32>
    %37 = arith.addf %33, %36 : vector<3x1xf32>
    %38 = math.rsqrt %37 : vector<3x1xf32>
    %39 = vector.broadcast %38 : vector<3x1xf32> to vector<3x16xf32>
    %40 = arith.mulf %35, %39 : vector<3x16xf32>
    %41 = vector.broadcast %9 : vector<1x16xf32> to vector<3x16xf32>
    %42 = arith.mulf %40, %41 : vector<3x16xf32>
    %43 = vector.broadcast %10 : vector<1x16xf32> to vector<3x16xf32>
    %44 = arith.addf %42, %43 : vector<3x16xf32>
    %cst_20 = arith.constant dense<0.000000e+00> : vector<3x144xf32>
    %45 = tpu.matmul %44, %18, %cst_20 {dimension_numbers = #tpu.dot_dimension_numbers<[1], [0], [0], [1], [0, 0, 1, 1], [], []>} : vector<3x16xf32>, vector<16x144xf32>, vector<3x144xf32> -> vector<3x144xf32>
    %46 = vector.extract_strided_slice %45 {offsets = [0, 0], sizes = [3, 16], strides = [1, 1]} : vector<3x144xf32> to vector<3x16xf32>
    %47 = vector.extract_strided_slice %45 {offsets = [0, 48], sizes = [3, 16], strides = [1, 1]} : vector<3x144xf32> to vector<3x16xf32>
    %48 = vector.extract_strided_slice %45 {offsets = [0, 96], sizes = [3, 16], strides = [1, 1]} : vector<3x144xf32> to vector<3x16xf32>
    %49 = tpu.transpose %47, [1, 0] : vector<3x16xf32> -> vector<16x3xf32>
    %cst_21 = arith.constant dense<0.000000e+00> : vector<3x3xf32>
    %50 = tpu.matmul %46, %49, %cst_21 {dimension_numbers = #tpu.dot_dimension_numbers<[1], [0], [0], [1], [0, 0, 1, 1], [], []>} : vector<3x16xf32>, vector<16x3xf32>, vector<3x3xf32> -> vector<3x3xf32>
    %cst_22 = arith.constant dense<0xFF800000> : vector<3xf32>
    %51 = vector.multi_reduction <maximumf>, %50, %cst_22 [1] : vector<3x3xf32> to vector<3xf32>
    %52 = vector.shape_cast %51 : vector<3xf32> to vector<3x1xf32>
    %53 = vector.broadcast %52 : vector<3x1xf32> to vector<3x3xf32>
    %54 = arith.subf %50, %53 : vector<3x3xf32>
    %55 = math.exp %54 : vector<3x3xf32>
    %cst_23 = arith.constant dense<0.000000e+00> : vector<3xf32>
    %56 = vector.multi_reduction <add>, %55, %cst_23 [1] : vector<3x3xf32> to vector<3xf32>
    %57 = vector.shape_cast %56 : vector<3xf32> to vector<3x1xf32>
    %58 = vector.broadcast %57 : vector<3x1xf32> to vector<3x3xf32>
    %59 = arith.divf %55, %58 : vector<3x3xf32>
    %cst_24 = arith.constant dense<0.000000e+00> : vector<3x16xf32>
    %60 = tpu.matmul %59, %48, %cst_24 {dimension_numbers = #tpu.dot_dimension_numbers<[1], [0], [0], [1], [0, 0, 1, 1], [], []>} : vector<3x3xf32>, vector<3x16xf32>, vector<3x16xf32> -> vector<3x16xf32>
    %61 = vector.extract_strided_slice %45 {offsets = [0, 16], sizes = [3, 16], strides = [1, 1]} : vector<3x144xf32> to vector<3x16xf32>
    %62 = vector.extract_strided_slice %45 {offsets = [0, 64], sizes = [3, 16], strides = [1, 1]} : vector<3x144xf32> to vector<3x16xf32>
    %63 = vector.extract_strided_slice %45 {offsets = [0, 112], sizes = [3, 16], strides = [1, 1]} : vector<3x144xf32> to vector<3x16xf32>
    %64 = tpu.transpose %62, [1, 0] : vector<3x16xf32> -> vector<16x3xf32>
    %cst_25 = arith.constant dense<0.000000e+00> : vector<3x3xf32>
    %65 = tpu.matmul %61, %64, %cst_25 {dimension_numbers = #tpu.dot_dimension_numbers<[1], [0], [0], [1], [0, 0, 1, 1], [], []>} : vector<3x16xf32>, vector<16x3xf32>, vector<3x3xf32> -> vector<3x3xf32>
    %cst_26 = arith.constant dense<0xFF800000> : vector<3xf32>
    %66 = vector.multi_reduction <maximumf>, %65, %cst_26 [1] : vector<3x3xf32> to vector<3xf32>
    %67 = vector.shape_cast %66 : vector<3xf32> to vector<3x1xf32>
    %68 = vector.broadcast %67 : vector<3x1xf32> to vector<3x3xf32>
    %69 = arith.subf %65, %68 : vector<3x3xf32>
    %70 = math.exp %69 : vector<3x3xf32>
    %cst_27 = arith.constant dense<0.000000e+00> : vector<3xf32>
    %71 = vector.multi_reduction <add>, %70, %cst_27 [1] : vector<3x3xf32> to vector<3xf32>
    %72 = vector.shape_cast %71 : vector<3xf32> to vector<3x1xf32>
    %73 = vector.broadcast %72 : vector<3x1xf32> to vector<3x3xf32>
    %74 = arith.divf %70, %73 : vector<3x3xf32>
    %cst_28 = arith.constant dense<0.000000e+00> : vector<3x16xf32>
    %75 = tpu.matmul %74, %63, %cst_28 {dimension_numbers = #tpu.dot_dimension_numbers<[1], [0], [0], [1], [0, 0, 1, 1], [], []>} : vector<3x3xf32>, vector<3x16xf32>, vector<3x16xf32> -> vector<3x16xf32>
    %76 = vector.extract_strided_slice %45 {offsets = [0, 32], sizes = [3, 16], strides = [1, 1]} : vector<3x144xf32> to vector<3x16xf32>
    %77 = vector.extract_strided_slice %45 {offsets = [0, 80], sizes = [3, 16], strides = [1, 1]} : vector<3x144xf32> to vector<3x16xf32>
    %78 = vector.extract_strided_slice %45 {offsets = [0, 128], sizes = [3, 16], strides = [1, 1]} : vector<3x144xf32> to vector<3x16xf32>
    %79 = tpu.transpose %77, [1, 0] : vector<3x16xf32> -> vector<16x3xf32>
    %cst_29 = arith.constant dense<0.000000e+00> : vector<3x3xf32>
    %80 = tpu.matmul %76, %79, %cst_29 {dimension_numbers = #tpu.dot_dimension_numbers<[1], [0], [0], [1], [0, 0, 1, 1], [], []>} : vector<3x16xf32>, vector<16x3xf32>, vector<3x3xf32> -> vector<3x3xf32>
    %cst_30 = arith.constant dense<0xFF800000> : vector<3xf32>
    %81 = vector.multi_reduction <maximumf>, %80, %cst_30 [1] : vector<3x3xf32> to vector<3xf32>
    %82 = vector.shape_cast %81 : vector<3xf32> to vector<3x1xf32>
    %83 = vector.broadcast %82 : vector<3x1xf32> to vector<3x3xf32>
    %84 = arith.subf %80, %83 : vector<3x3xf32>
    %85 = math.exp %84 : vector<3x3xf32>
    %cst_31 = arith.constant dense<0.000000e+00> : vector<3xf32>
    %86 = vector.multi_reduction <add>, %85, %cst_31 [1] : vector<3x3xf32> to vector<3xf32>
    %87 = vector.shape_cast %86 : vector<3xf32> to vector<3x1xf32>
    %88 = vector.broadcast %87 : vector<3x1xf32> to vector<3x3xf32>
    %89 = arith.divf %85, %88 : vector<3x3xf32>
    %cst_32 = arith.constant dense<0.000000e+00> : vector<3x16xf32>
    %90 = tpu.matmul %89, %78, %cst_32 {dimension_numbers = #tpu.dot_dimension_numbers<[1], [0], [0], [1], [0, 0, 1, 1], [], []>} : vector<3x3xf32>, vector<3x16xf32>, vector<3x16xf32> -> vector<3x16xf32>
    %91 = tpu.concatenate %60, %75, %90 in 1 : vector<3x16xf32>, vector<3x16xf32>, vector<3x16xf32> -> vector<3x48xf32>
    %cst_33 = arith.constant dense<0.000000e+00> : vector<3x16xf32>
    %92 = tpu.matmul %91, %21, %cst_33 {dimension_numbers = #tpu.dot_dimension_numbers<[1], [0], [0], [1], [0, 0, 1, 1], [], []>} : vector<3x48xf32>, vector<48x16xf32>, vector<3x16xf32> -> vector<3x16xf32>
    %93 = vector.broadcast %13 : vector<1x16xf32> to vector<3x16xf32>
    %94 = arith.addf %92, %93 : vector<3x16xf32>
    %95 = arith.addf %94, %6 : vector<3x16xf32>
    %cst_34 = arith.constant dense<0.000000e+00> : vector<3xf32>
    %96 = vector.multi_reduction <add>, %95, %cst_34 [1] : vector<3x16xf32> to vector<3xf32>
    %97 = vector.shape_cast %96 : vector<3xf32> to vector<3x1xf32>
    %cst_35 = arith.constant 1.600000e+01 : f32
    %98 = vector.broadcast %cst_35 : f32 to vector<3x1xf32>
    %99 = arith.divf %97, %98 : vector<3x1xf32>
    %100 = arith.mulf %95, %95 : vector<3x16xf32>
    %cst_36 = arith.constant dense<0.000000e+00> : vector<3xf32>
    %101 = vector.multi_reduction <add>, %100, %cst_36 [1] : vector<3x16xf32> to vector<3xf32>
    %102 = vector.shape_cast %101 : vector<3xf32> to vector<3x1xf32>
    %cst_37 = arith.constant 1.600000e+01 : f32
    %103 = vector.broadcast %cst_37 : f32 to vector<3x1xf32>
    %104 = arith.divf %102, %103 : vector<3x1xf32>
    %105 = arith.mulf %99, %99 : vector<3x1xf32>
    %106 = arith.subf %104, %105 : vector<3x1xf32>
    %107 = vector.broadcast %99 : vector<3x1xf32> to vector<3x16xf32>
    %108 = arith.subf %95, %107 : vector<3x16xf32>
    %cst_38 = arith.constant 9.99999974E-6 : f32
    %109 = vector.broadcast %cst_38 : f32 to vector<3x1xf32>
    %110 = arith.addf %106, %109 : vector<3x1xf32>
    %111 = math.rsqrt %110 : vector<3x1xf32>
    %112 = vector.broadcast %111 : vector<3x1xf32> to vector<3x16xf32>
    %113 = arith.mulf %108, %112 : vector<3x16xf32>
    %114 = vector.broadcast %11 : vector<1x16xf32> to vector<3x16xf32>
    %115 = arith.mulf %113, %114 : vector<3x16xf32>
    %116 = vector.broadcast %12 : vector<1x16xf32> to vector<3x16xf32>
    %117 = arith.addf %115, %116 : vector<3x16xf32>
    %cst_39 = arith.constant dense<0.000000e+00> : vector<3x64xf32>
    %118 = tpu.matmul %117, %16, %cst_39 {dimension_numbers = #tpu.dot_dimension_numbers<[1], [0], [0], [1], [0, 0, 1, 1], [], []>} : vector<3x16xf32>, vector<16x64xf32>, vector<3x64xf32> -> vector<3x64xf32>
    %119 = vector.broadcast %15 : vector<1x64xf32> to vector<3x64xf32>
    %120 = arith.addf %118, %119 : vector<3x64xf32>
    %cst_40 = arith.constant 5.000000e-01 : f32
    %121 = vector.broadcast %cst_40 : f32 to vector<3x64xf32>
    %122 = arith.mulf %121, %120 : vector<3x64xf32>
    %cst_41 = arith.constant 0.707106769 : f32
    %123 = vector.broadcast %cst_41 : f32 to vector<3x64xf32>
    %124 = arith.mulf %120, %123 : vector<3x64xf32>
    %125 = math.erf %124 : vector<3x64xf32>
    %cst_42 = arith.constant 1.000000e+00 : f32
    %126 = vector.broadcast %cst_42 : f32 to vector<3x64xf32>
    %127 = arith.addf %126, %125 : vector<3x64xf32>
    %128 = arith.mulf %122, %127 : vector<3x64xf32>
    %cst_43 = arith.constant dense<0.000000e+00> : vector<3x16xf32>
    %129 = tpu.matmul %128, %22, %cst_43 {dimension_numbers = #tpu.dot_dimension_numbers<[1], [0], [0], [1], [0, 0, 1, 1], [], []>} : vector<3x64xf32>, vector<64x16xf32>, vector<3x16xf32> -> vector<3x16xf32>
    %130 = vector.broadcast %14 : vector<1x16xf32> to vector<3x16xf32>
    %131 = arith.addf %129, %130 : vector<3x16xf32>
    %132 = arith.addf %131, %95 : vector<3x16xf32>
    %c1 = arith.constant 1 : index
    %c0_44 = arith.constant 0 : index
    %c0_45 = arith.constant 0 : index
    %133 = vector.load %arg2[%c1, %c0_44, %c0_45] : memref<2x24x64xf32, #tpu.memory_space<vmem>>, vector<1x24x64xf32>
    %134 = vector.shape_cast %133 : vector<1x24x64xf32> to vector<24x64xf32>
    %135 = vector.extract_strided_slice %134 {offsets = [0, 0], sizes = [1, 16], strides = [1, 1]} : vector<24x64xf32> to vector<1x16xf32>
    %136 = vector.extract_strided_slice %134 {offsets = [1, 0], sizes = [1, 16], strides = [1, 1]} : vector<24x64xf32> to vector<1x16xf32>
    %137 = vector.extract_strided_slice %134 {offsets = [2, 0], sizes = [1, 16], strides = [1, 1]} : vector<24x64xf32> to vector<1x16xf32>
    %138 = vector.extract_strided_slice %134 {offsets = [3, 0], sizes = [1, 16], strides = [1, 1]} : vector<24x64xf32> to vector<1x16xf32>
    %139 = vector.extract_strided_slice %134 {offsets = [4, 0], sizes = [1, 16], strides = [1, 1]} : vector<24x64xf32> to vector<1x16xf32>
    %140 = vector.extract_strided_slice %134 {offsets = [5, 0], sizes = [1, 16], strides = [1, 1]} : vector<24x64xf32> to vector<1x16xf32>
    %141 = vector.extract_strided_slice %134 {offsets = [6, 0], sizes = [1, 64], strides = [1, 1]} : vector<24x64xf32> to vector<1x64xf32>
    %142 = vector.extract_strided_slice %134 {offsets = [8, 0], sizes = [16, 64], strides = [1, 1]} : vector<24x64xf32> to vector<16x64xf32>
    %c1_46 = arith.constant 1 : index
    %c0_47 = arith.constant 0 : index
    %c0_48 = arith.constant 0 : index
    %143 = vector.load %arg3[%c1_46, %c0_47, %c0_48] : memref<2x16x144xf32, #tpu.memory_space<vmem>>, vector<1x16x144xf32>
    %144 = vector.shape_cast %143 : vector<1x16x144xf32> to vector<16x144xf32>
    %c1_49 = arith.constant 1 : index
    %c0_50 = arith.constant 0 : index
    %c0_51 = arith.constant 0 : index
    %145 = vector.load %arg4[%c1_49, %c0_50, %c0_51] : memref<2x112x16xf32, #tpu.memory_space<vmem>>, vector<1x112x16xf32>
    %146 = vector.shape_cast %145 : vector<1x112x16xf32> to vector<112x16xf32>
    %147 = vector.extract_strided_slice %146 {offsets = [0, 0], sizes = [48, 16], strides = [1, 1]} : vector<112x16xf32> to vector<48x16xf32>
    %148 = vector.extract_strided_slice %146 {offsets = [48, 0], sizes = [64, 16], strides = [1, 1]} : vector<112x16xf32> to vector<64x16xf32>
    %cst_52 = arith.constant dense<0.000000e+00> : vector<3xf32>
    %149 = vector.multi_reduction <add>, %132, %cst_52 [1] : vector<3x16xf32> to vector<3xf32>
    %150 = vector.shape_cast %149 : vector<3xf32> to vector<3x1xf32>
    %cst_53 = arith.constant 1.600000e+01 : f32
    %151 = vector.broadcast %cst_53 : f32 to vector<3x1xf32>
    %152 = arith.divf %150, %151 : vector<3x1xf32>
    %153 = arith.mulf %132, %132 : vector<3x16xf32>
    %cst_54 = arith.constant dense<0.000000e+00> : vector<3xf32>
    %154 = vector.multi_reduction <add>, %153, %cst_54 [1] : vector<3x16xf32> to vector<3xf32>
    %155 = vector.shape_cast %154 : vector<3xf32> to vector<3x1xf32>
    %cst_55 = arith.constant 1.600000e+01 : f32
    %156 = vector.broadcast %cst_55 : f32 to vector<3x1xf32>
    %157 = arith.divf %155, %156 : vector<3x1xf32>
    %158 = arith.mulf %152, %152 : vector<3x1xf32>
    %159 = arith.subf %157, %158 : vector<3x1xf32>
    %160 = vector.broadcast %152 : vector<3x1xf32> to vector<3x16xf32>
    %161 = arith.subf %132, %160 : vector<3x16xf32>
    %cst_56 = arith.constant 9.99999974E-6 : f32
    %162 = vector.broadcast %cst_56 : f32 to vector<3x1xf32>
    %163 = arith.addf %159, %162 : vector<3x1xf32>
    %164 = math.rsqrt %163 : vector<3x1xf32>
    %165 = vector.broadcast %164 : vector<3x1xf32> to vector<3x16xf32>
    %166 = arith.mulf %161, %165 : vector<3x16xf32>
    %167 = vector.broadcast %135 : vector<1x16xf32> to vector<3x16xf32>
    %168 = arith.mulf %166, %167 : vector<3x16xf32>
    %169 = vector.broadcast %136 : vector<1x16xf32> to vector<3x16xf32>
    %170 = arith.addf %168, %169 : vector<3x16xf32>
    %cst_57 = arith.constant dense<0.000000e+00> : vector<3x144xf32>
    %171 = tpu.matmul %170, %144, %cst_57 {dimension_numbers = #tpu.dot_dimension_numbers<[1], [0], [0], [1], [0, 0, 1, 1], [], []>} : vector<3x16xf32>, vector<16x144xf32>, vector<3x144xf32> -> vector<3x144xf32>
    %172 = vector.extract_strided_slice %171 {offsets = [0, 0], sizes = [3, 16], strides = [1, 1]} : vector<3x144xf32> to vector<3x16xf32>
    %173 = vector.extract_strided_slice %171 {offsets = [0, 48], sizes = [3, 16], strides = [1, 1]} : vector<3x144xf32> to vector<3x16xf32>
    %174 = vector.extract_strided_slice %171 {offsets = [0, 96], sizes = [3, 16], strides = [1, 1]} : vector<3x144xf32> to vector<3x16xf32>
    %175 = tpu.transpose %173, [1, 0] : vector<3x16xf32> -> vector<16x3xf32>
    %cst_58 = arith.constant dense<0.000000e+00> : vector<3x3xf32>
    %176 = tpu.matmul %172, %175, %cst_58 {dimension_numbers = #tpu.dot_dimension_numbers<[1], [0], [0], [1], [0, 0, 1, 1], [], []>} : vector<3x16xf32>, vector<16x3xf32>, vector<3x3xf32> -> vector<3x3xf32>
    %cst_59 = arith.constant dense<0xFF800000> : vector<3xf32>
    %177 = vector.multi_reduction <maximumf>, %176, %cst_59 [1] : vector<3x3xf32> to vector<3xf32>
    %178 = vector.shape_cast %177 : vector<3xf32> to vector<3x1xf32>
    %179 = vector.broadcast %178 : vector<3x1xf32> to vector<3x3xf32>
    %180 = arith.subf %176, %179 : vector<3x3xf32>
    %181 = math.exp %180 : vector<3x3xf32>
    %cst_60 = arith.constant dense<0.000000e+00> : vector<3xf32>
    %182 = vector.multi_reduction <add>, %181, %cst_60 [1] : vector<3x3xf32> to vector<3xf32>
    %183 = vector.shape_cast %182 : vector<3xf32> to vector<3x1xf32>
    %184 = vector.broadcast %183 : vector<3x1xf32> to vector<3x3xf32>
    %185 = arith.divf %181, %184 : vector<3x3xf32>
    %cst_61 = arith.constant dense<0.000000e+00> : vector<3x16xf32>
    %186 = tpu.matmul %185, %174, %cst_61 {dimension_numbers = #tpu.dot_dimension_numbers<[1], [0], [0], [1], [0, 0, 1, 1], [], []>} : vector<3x3xf32>, vector<3x16xf32>, vector<3x16xf32> -> vector<3x16xf32>
    %187 = vector.extract_strided_slice %171 {offsets = [0, 16], sizes = [3, 16], strides = [1, 1]} : vector<3x144xf32> to vector<3x16xf32>
    %188 = vector.extract_strided_slice %171 {offsets = [0, 64], sizes = [3, 16], strides = [1, 1]} : vector<3x144xf32> to vector<3x16xf32>
    %189 = vector.extract_strided_slice %171 {offsets = [0, 112], sizes = [3, 16], strides = [1, 1]} : vector<3x144xf32> to vector<3x16xf32>
    %190 = tpu.transpose %188, [1, 0] : vector<3x16xf32> -> vector<16x3xf32>
    %cst_62 = arith.constant dense<0.000000e+00> : vector<3x3xf32>
    %191 = tpu.matmul %187, %190, %cst_62 {dimension_numbers = #tpu.dot_dimension_numbers<[1], [0], [0], [1], [0, 0, 1, 1], [], []>} : vector<3x16xf32>, vector<16x3xf32>, vector<3x3xf32> -> vector<3x3xf32>
    %cst_63 = arith.constant dense<0xFF800000> : vector<3xf32>
    %192 = vector.multi_reduction <maximumf>, %191, %cst_63 [1] : vector<3x3xf32> to vector<3xf32>
    %193 = vector.shape_cast %192 : vector<3xf32> to vector<3x1xf32>
    %194 = vector.broadcast %193 : vector<3x1xf32> to vector<3x3xf32>
    %195 = arith.subf %191, %194 : vector<3x3xf32>
    %196 = math.exp %195 : vector<3x3xf32>
    %cst_64 = arith.constant dense<0.000000e+00> : vector<3xf32>
    %197 = vector.multi_reduction <add>, %196, %cst_64 [1] : vector<3x3xf32> to vector<3xf32>
    %198 = vector.shape_cast %197 : vector<3xf32> to vector<3x1xf32>
    %199 = vector.broadcast %198 : vector<3x1xf32> to vector<3x3xf32>
    %200 = arith.divf %196, %199 : vector<3x3xf32>
    %cst_65 = arith.constant dense<0.000000e+00> : vector<3x16xf32>
    %201 = tpu.matmul %200, %189, %cst_65 {dimension_numbers = #tpu.dot_dimension_numbers<[1], [0], [0], [1], [0, 0, 1, 1], [], []>} : vector<3x3xf32>, vector<3x16xf32>, vector<3x16xf32> -> vector<3x16xf32>
    %202 = vector.extract_strided_slice %171 {offsets = [0, 32], sizes = [3, 16], strides = [1, 1]} : vector<3x144xf32> to vector<3x16xf32>
    %203 = vector.extract_strided_slice %171 {offsets = [0, 80], sizes = [3, 16], strides = [1, 1]} : vector<3x144xf32> to vector<3x16xf32>
    %204 = vector.extract_strided_slice %171 {offsets = [0, 128], sizes = [3, 16], strides = [1, 1]} : vector<3x144xf32> to vector<3x16xf32>
    %205 = tpu.transpose %203, [1, 0] : vector<3x16xf32> -> vector<16x3xf32>
    %cst_66 = arith.constant dense<0.000000e+00> : vector<3x3xf32>
    %206 = tpu.matmul %202, %205, %cst_66 {dimension_numbers = #tpu.dot_dimension_numbers<[1], [0], [0], [1], [0, 0, 1, 1], [], []>} : vector<3x16xf32>, vector<16x3xf32>, vector<3x3xf32> -> vector<3x3xf32>
    %cst_67 = arith.constant dense<0xFF800000> : vector<3xf32>
    %207 = vector.multi_reduction <maximumf>, %206, %cst_67 [1] : vector<3x3xf32> to vector<3xf32>
    %208 = vector.shape_cast %207 : vector<3xf32> to vector<3x1xf32>
    %209 = vector.broadcast %208 : vector<3x1xf32> to vector<3x3xf32>
    %210 = arith.subf %206, %209 : vector<3x3xf32>
    %211 = math.exp %210 : vector<3x3xf32>
    %cst_68 = arith.constant dense<0.000000e+00> : vector<3xf32>
    %212 = vector.multi_reduction <add>, %211, %cst_68 [1] : vector<3x3xf32> to vector<3xf32>
    %213 = vector.shape_cast %212 : vector<3xf32> to vector<3x1xf32>
    %214 = vector.broadcast %213 : vector<3x1xf32> to vector<3x3xf32>
    %215 = arith.divf %211, %214 : vector<3x3xf32>
    %cst_69 = arith.constant dense<0.000000e+00> : vector<3x16xf32>
    %216 = tpu.matmul %215, %204, %cst_69 {dimension_numbers = #tpu.dot_dimension_numbers<[1], [0], [0], [1], [0, 0, 1, 1], [], []>} : vector<3x3xf32>, vector<3x16xf32>, vector<3x16xf32> -> vector<3x16xf32>
    %217 = tpu.concatenate %186, %201, %216 in 1 : vector<3x16xf32>, vector<3x16xf32>, vector<3x16xf32> -> vector<3x48xf32>
    %cst_70 = arith.constant dense<0.000000e+00> : vector<3x16xf32>
    %218 = tpu.matmul %217, %147, %cst_70 {dimension_numbers = #tpu.dot_dimension_numbers<[1], [0], [0], [1], [0, 0, 1, 1], [], []>} : vector<3x48xf32>, vector<48x16xf32>, vector<3x16xf32> -> vector<3x16xf32>
    %219 = vector.broadcast %139 : vector<1x16xf32> to vector<3x16xf32>
    %220 = arith.addf %218, %219 : vector<3x16xf32>
    %221 = arith.addf %220, %132 : vector<3x16xf32>
    %cst_71 = arith.constant dense<0.000000e+00> : vector<3xf32>
    %222 = vector.multi_reduction <add>, %221, %cst_71 [1] : vector<3x16xf32> to vector<3xf32>
    %223 = vector.shape_cast %222 : vector<3xf32> to vector<3x1xf32>
    %cst_72 = arith.constant 1.600000e+01 : f32
    %224 = vector.broadcast %cst_72 : f32 to vector<3x1xf32>
    %225 = arith.divf %223, %224 : vector<3x1xf32>
    %226 = arith.mulf %221, %221 : vector<3x16xf32>
    %cst_73 = arith.constant dense<0.000000e+00> : vector<3xf32>
    %227 = vector.multi_reduction <add>, %226, %cst_73 [1] : vector<3x16xf32> to vector<3xf32>
    %228 = vector.shape_cast %227 : vector<3xf32> to vector<3x1xf32>
    %cst_74 = arith.constant 1.600000e+01 : f32
    %229 = vector.broadcast %cst_74 : f32 to vector<3x1xf32>
    %230 = arith.divf %228, %229 : vector<3x1xf32>
    %231 = arith.mulf %225, %225 : vector<3x1xf32>
    %232 = arith.subf %230, %231 : vector<3x1xf32>
    %233 = vector.broadcast %225 : vector<3x1xf32> to vector<3x16xf32>
    %234 = arith.subf %221, %233 : vector<3x16xf32>
    %cst_75 = arith.constant 9.99999974E-6 : f32
    %235 = vector.broadcast %cst_75 : f32 to vector<3x1xf32>
    %236 = arith.addf %232, %235 : vector<3x1xf32>
    %237 = math.rsqrt %236 : vector<3x1xf32>
    %238 = vector.broadcast %237 : vector<3x1xf32> to vector<3x16xf32>
    %239 = arith.mulf %234, %238 : vector<3x16xf32>
    %240 = vector.broadcast %137 : vector<1x16xf32> to vector<3x16xf32>
    %241 = arith.mulf %239, %240 : vector<3x16xf32>
    %242 = vector.broadcast %138 : vector<1x16xf32> to vector<3x16xf32>
    %243 = arith.addf %241, %242 : vector<3x16xf32>
    %cst_76 = arith.constant dense<0.000000e+00> : vector<3x64xf32>
    %244 = tpu.matmul %243, %142, %cst_76 {dimension_numbers = #tpu.dot_dimension_numbers<[1], [0], [0], [1], [0, 0, 1, 1], [], []>} : vector<3x16xf32>, vector<16x64xf32>, vector<3x64xf32> -> vector<3x64xf32>
    %245 = vector.broadcast %141 : vector<1x64xf32> to vector<3x64xf32>
    %246 = arith.addf %244, %245 : vector<3x64xf32>
    %cst_77 = arith.constant 5.000000e-01 : f32
    %247 = vector.broadcast %cst_77 : f32 to vector<3x64xf32>
    %248 = arith.mulf %247, %246 : vector<3x64xf32>
    %cst_78 = arith.constant 0.707106769 : f32
    %249 = vector.broadcast %cst_78 : f32 to vector<3x64xf32>
    %250 = arith.mulf %246, %249 : vector<3x64xf32>
    %251 = math.erf %250 : vector<3x64xf32>
    %cst_79 = arith.constant 1.000000e+00 : f32
    %252 = vector.broadcast %cst_79 : f32 to vector<3x64xf32>
    %253 = arith.addf %252, %251 : vector<3x64xf32>
    %254 = arith.mulf %248, %253 : vector<3x64xf32>
    %cst_80 = arith.constant dense<0.000000e+00> : vector<3x16xf32>
    %255 = tpu.matmul %254, %148, %cst_80 {dimension_numbers = #tpu.dot_dimension_numbers<[1], [0], [0], [1], [0, 0, 1, 1], [], []>} : vector<3x64xf32>, vector<64x16xf32>, vector<3x16xf32> -> vector<3x16xf32>
    %256 = vector.broadcast %140 : vector<1x16xf32> to vector<3x16xf32>
    %257 = arith.addf %255, %256 : vector<3x16xf32>
    %258 = arith.addf %257, %221 : vector<3x16xf32>
    %cst_81 = arith.constant dense<0.000000e+00> : vector<3x32xf32>
    %259 = tpu.matmul %258, %1, %cst_81 {dimension_numbers = #tpu.dot_dimension_numbers<[1], [0], [0], [1], [0, 0, 1, 1], [], []>} : vector<3x16xf32>, vector<16x32xf32>, vector<3x32xf32> -> vector<3x32xf32>
    %260 = vector.broadcast %3 : vector<1x32xf32> to vector<3x32xf32>
    %261 = arith.addf %259, %260 : vector<3x32xf32>
    %c0_82 = arith.constant 0 : index
    %c0_83 = arith.constant 0 : index
    %262 = vector.load %arg5[%c0_82, %c0_83] : memref<3x32xf32, #tpu.memory_space<vmem>>, vector<3x32xf32>
    tpu.vector_store %arg5[%c0_82, %c0_83], %261 {strides = array<i32>} : memref<3x32xf32, #tpu.memory_space<vmem>>, vector<3x32xf32>,
    return
  }
}

</mosaic_0001>

<llo_original>
// kernel: transformer_structure_forward.1
$region0: #{transformer_structure_forward.1}
  #allocation0 [shape = 'u32[]', space=smem, size = 0x4, offset = 0x4, fixed_abs, tag = 'smem constant byte address 0x4 - core index']
  #allocation1 [shape = 'u32[144,128]{1,0:T(1,128)}', space=vmem, size = 0x12000, scoped, tag = 'internal scratch']
  %s0 = inlined_call_operand.vmem [shape: f32[3,32], index: 0, kind: input, shape index: {}]
  %s1 = inlined_call_operand.vmem [shape: f32[52,32], index: 1, kind: input, shape index: {}]
  %s2 = inlined_call_operand.vmem [shape: f32[2,24,64], index: 2, kind: input, shape index: {}]
  %s3 = inlined_call_operand.vmem [shape: f32[2,16,144], index: 3, kind: input, shape index: {}]
  %s4 = inlined_call_operand.vmem [shape: f32[2,112,16], index: 4, kind: input, shape index: {}]
  %s5 = inlined_call_operand.vmem [shape: f32[3,32], index: 5, kind: output, shape index: {}]
  %s6 = sld [smem:[#allocation0]]
  $region30: #{transformer_structure_forward.1} parent=0
    _
  %s8 = ssub.s32 1, %s6
  %s9 = scalar_select 0, %s8, %s6
  // Predicated region
  $region2: #{transformer_structure_forward.1} parent=0 // pred_check
    _
  $region3: #{transformer_structure_forward.1} parent=0 // pred_check_branch
    %11 = sbr.rel (0) target = $region5
  $region4: #{transformer_structure_forward.1} parent=0 // pred_region
    _
  $region5: #{transformer_structure_forward.1} parent=0 // pred_fallthru
    _
  // Predicated region
  $region6: #{transformer_structure_forward.1} parent=0 // pred_check
    _
  $region7: #{transformer_structure_forward.1} parent=0 // pred_check_branch
    %13 = sbr.rel (0) target = $region9
  $region8: #{transformer_structure_forward.1} parent=0 // pred_region
    _
  $region9: #{transformer_structure_forward.1} parent=0 // pred_fallthru
    _
  // Predicated region
  $region10: #{transformer_structure_forward.1} parent=0 // pred_check
    _
  $region11: #{transformer_structure_forward.1} parent=0 // pred_check_branch
    %15 = sbr.rel (0) target = $region13
  $region12: #{transformer_structure_forward.1} parent=0 // pred_region
    _
  $region13: #{transformer_structure_forward.1} parent=0 // pred_fallthru
    _
  // Predicated region
  $region14: #{transformer_structure_forward.1} parent=0 // pred_check
    _
  $region15: #{transformer_structure_forward.1} parent=0 // pred_check_branch
    %17 = sbr.rel (0) target = $region17
  $region16: #{transformer_structure_forward.1} parent=0 // pred_region
    _
  $region17: #{transformer_structure_forward.1} parent=0 // pred_fallthru
    _
  // Predicated region
  $region18: #{transformer_structure_forward.1} parent=0 // pred_check
    _
  $region19: #{transformer_structure_forward.1} parent=0 // pred_check_branch
    %19 = sbr.rel (0) target = $region21
  $region20: #{transformer_structure_forward.1} parent=0 // pred_region
    _
  $region21: #{transformer_structure_forward.1} parent=0 // pred_fallthru
    _
  %v20 = vld [vmem:[%s1] sm:$0xff]
  %v21 = vld [vmem:[%s1 + $0x8] sm:$0xff]
  %v22 = vld [vmem:[%s1 + $0x10] sm:$0xff]
  %v23 = vld [vmem:[%s1 + $0x18] sm:$0xff]
  %v24 = vld [vmem:[%s1 + $0x20] sm:$0xff]
  %v25 = vld [vmem:[%s1 + $0x28] sm:$0xff]
  %v26 = vld [vmem:[%s1 + $0x30] sm:$0x7]
  %v27 = vld [vmem:[%s1 + $0x33] sm:$0x1]
  %v28 = vld [vmem:[%s0] sm:$0x7]
  %vm29 = vcmask 261120
  %v31 = vsel %vm29, %v28, 0
  %33 = vmatprep.subr.mxu0 0.0
  %34 = vmatpush1.msra.mxu0 0.0
  %35 = vmatprep.subr.mxu0 0.0
  %36 = vmatpush1.msra.mxu0 0.0
  %37 = vmatprep.subr.mxu0 0.0
  %38 = vmatpush1.msra.mxu0 0.0
  %39 = vmatprep.subr.mxu0 0.0
  %40 = vmatpush1.msra.mxu0 0.0
  %41 = vmatprep.subr.mxu0 0.0
  %42 = vmatpush1.msra.mxu0 0.0
  %43 = vmatprep.subr.mxu0 0.0
  %44 = vmatpush1.msra.mxu0 0.0
  %45 = vmatprep.subr.mxu0 0.0
  %46 = vmatpush1.msra.mxu0 0.0
  %47 = vmatprep.subr.mxu0 0.0
  %48 = vmatpush1.msra.mxu0 0.0
  %49 = vmatprep.subr.mxu0 0.0
  %50 = vmatpush1.msra.mxu0 0.0
  %51 = vmatprep.subr.mxu0 0.0
  %52 = vmatpush1.msra.mxu0 0.0
  %53 = vmatprep.subr.mxu0 0.0
  %54 = vmatpush1.msra.mxu0 0.0
  %55 = vmatprep.subr.mxu0 0.0
  %56 = vmatpush1.msra.mxu0 0.0
  %57 = vmatprep.subr.mxu0 0.0
  %58 = vmatpush1.msra.mxu0 %v23
  %59 = vmatprep.subr.mxu0 0.0
  %60 = vmatpush1.msra.mxu0 %v22
  %61 = vmatprep.subr.mxu0 0.0
  %62 = vmatpush1.msra.mxu0 %v21
  %63 = vmatprep.subr.mxu0 0.0
  %64 = vmatpush1.msra.mxu0 %v20
  %65 = vmatprep.subr.mxu0 0.0
  %66 = vmatpush2.msra.mxu0 0.0
  %67 = vmatprep.subr.mxu0 0.0
  %68 = vmatpush2.msra.mxu0 0.0
  %69 = vmatprep.subr.mxu0 0.0
  %70 = vmatpush2.msra.mxu0 0.0
  %71 = vmatprep.subr.mxu0 0.0
  %72 = vmatpush2.msra.mxu0 0.0
  %73 = vmatprep.subr.mxu0 0.0
  %74 = vmatpush2.msra.mxu0 0.0
  %75 = vmatprep.subr.mxu0 0.0
  %76 = vmatpush2.msra.mxu0 0.0
  %77 = vmatprep.subr.mxu0 0.0
  %78 = vmatpush2.msra.mxu0 0.0
  %79 = vmatprep.subr.mxu0 0.0
  %80 = vmatpush2.msra.mxu0 0.0
  %81 = vmatprep.subr.mxu0 0.0
  %82 = vmatpush2.msra.mxu0 0.0
  %83 = vmatprep.subr.mxu0 0.0
  %84 = vmatpush2.msra.mxu0 0.0
  %85 = vmatprep.subr.mxu0 0.0
  %86 = vmatpush2.msra.mxu0 0.0
  %87 = vmatprep.subr.mxu0 0.0
  %88 = vmatpush2.msra.mxu0 0.0
  %89 = vmatprep.subr.mxu0 0.0
  %90 = vmatpush2.msra.mxu0 0.0
  %91 = vmatprep.subr.mxu0 0.0
  %92 = vmatpush2.msra.mxu0 0.0
  %93 = vmatprep.subr.mxu0 0.0
  %94 = vmatpush2.msra.mxu0 0.0
  %95 = vmatprep.subr.mxu0 0.0
  %96 = vmatpush2.msra.mxu0 0.0
  %97 = vmatprep.mubr.f32.mxu0 0.0
  %98 = vmatmul.mubr.f32.gmra.mxu0 %v31
  %v99 = vpop.f32.mrf.mxu0
  %v100 = vadd.f32 %v26, %v99
  %v101 = vpop.f32.mrf.mxu0
  %102 = vdwg.mxu0
  %v103 = vld [vmem:[%s2] sm:$0xff]
  %v104 = vld [vmem:[%s2 + $0x8] sm:$0xff]
  %v105 = vld [vmem:[%s2 + $0x10] sm:$0xff]
  %v106 = vld [vmem:[%s3] sm:$0xff]
  %v107 = vld [vmem:[%s3 + $0x8] sm:$0xff]
  %v108 = vld [vmem:[%s3 + $0x10] sm:$0xff]
  %v109 = vld [vmem:[%s3 + $0x18] sm:$0xff]
  %v110 = vld [vmem:[%s4] sm:$0xff]
  %v111 = vld [vmem:[%s4 + $0x8] sm:$0xff]
  %v112 = vld [vmem:[%s4 + $0x10] sm:$0xff]
  %v113 = vld [vmem:[%s4 + $0x18] sm:$0xff]
  %v114 = vld [vmem:[%s4 + $0x20] sm:$0xff]
  %v115 = vld [vmem:[%s4 + $0x28] sm:$0xff]
  %v116 = vld [vmem:[%s4 + $0x30] sm:$0xff]
  %v117 = vld [vmem:[%s4 + $0x38] sm:$0xff]
  %v118 = vld [vmem:[%s4 + $0x40] sm:$0xff]
  %v119 = vld [vmem:[%s4 + $0x48] sm:$0xff]
  %v120 = vld [vmem:[%s4 + $0x50] sm:$0xff]
  %v121 = vld [vmem:[%s4 + $0x58] sm:$0xff]
  %v122 = vld [vmem:[%s4 + $0x60] sm:$0xff]
  %v123 = vld [vmem:[%s4 + $0x68] sm:$0xff]
  %vm124 = vcmask 124928
  %v125 = vsel %vm124, %v100, 0.0
  %126 = vadd.xlane.f32.xlu0 %v125
  %v127 = vpop.xlane.xlu0 %126
  %v128 = vrcp.pop 16.0
  %v129 = vmul.f32 %v127, %v128
  %v130 = vmul.f32 %v100, %v100
  %v131 = vsel %vm124, %v130, 0.0
  %132 = vadd.xlane.f32.xlu0 %v131
  %v133 = vpop.xlane.xlu0 %132
  %v134 = vmul.f32 %v133, %v128
  %v135 = vmul.f32 %v129, %v129
  %v136 = vsub.f32 %v134, %v135
  %v137 = vsub.f32 %v100, %v129
  %v138 = vadd.f32 %v136, 1e-05
  %v139 = vrsqrt.pop %v138
  %v140 = vmul.f32 %v137, %v139
  %v141 = vlaneseq
  %v142 = vshrl.u32 %v141, 7
  %v143 = vsub.s32 0, %v142
  %v144 = vrot.slane %v103, %v143
  %v145 = vmul.f32 %v140, %v144
  %v146 = vlaneseq
  %v147 = vshrl.u32 %v146, 7
  %v148 = vsub.s32 1, %v147
  %v149 = vrot.slane %v103, %v148
  %v150 = vadd.f32 %v145, %v149
  %vm151 = vcmask 130048
  %v153 = vsel %vm151, %v150, 0
  %155 = vmatprep.subr.mxu0 0.0
  %156 = vmatpush1.msra.mxu0 0.0
  %157 = vmatprep.subr.mxu0 0.0
  %158 = vmatpush1.msra.mxu0 0.0
  %159 = vmatprep.subr.mxu0 0.0
  %160 = vmatpush1.msra.mxu0 0.0
  %161 = vmatprep.subr.mxu0 0.0
  %162 = vmatpush1.msra.mxu0 0.0
  %163 = vmatprep.subr.mxu0 0.0
  %164 = vmatpush1.msra.mxu0 0.0
  %165 = vmatprep.subr.mxu0 0.0
  %166 = vmatpush1.msra.mxu0 0.0
  %167 = vmatprep.subr.mxu0 0.0
  %168 = vmatpush1.msra.mxu0 0.0
  %169 = vmatprep.subr.mxu0 0.0
  %170 = vmatpush1.msra.mxu0 0.0
  %171 = vmatprep.subr.mxu0 0.0
  %172 = vmatpush1.msra.mxu0 0.0
  %173 = vmatprep.subr.mxu0 0.0
  %174 = vmatpush1.msra.mxu0 0.0
  %175 = vmatprep.subr.mxu0 0.0
  %176 = vmatpush1.msra.mxu0 0.0
  %177 = vmatprep.subr.mxu0 0.0
  %178 = vmatpush1.msra.mxu0 0.0
  %179 = vmatprep.subr.mxu0 0.0
  %180 = vmatpush1.msra.mxu0 0.0
  %181 = vmatprep.subr.mxu0 0.0
  %182 = vmatpush1.msra.mxu0 0.0
  %183 = vmatprep.subr.mxu0 %v109
  %184 = vmatpush1.msra.mxu0 %v108
  %185 = vmatprep.subr.mxu0 %v107
  %186 = vmatpush1.msra.mxu0 %v106
  %187 = vmatprep.subr.mxu0 0.0
  %188 = vmatpush2.msra.mxu0 0.0
  %189 = vmatprep.subr.mxu0 0.0
  %190 = vmatpush2.msra.mxu0 0.0
  %191 = vmatprep.subr.mxu0 0.0
  %192 = vmatpush2.msra.mxu0 0.0
  %193 = vmatprep.subr.mxu0 0.0
  %194 = vmatpush2.msra.mxu0 0.0
  %195 = vmatprep.subr.mxu0 0.0
  %196 = vmatpush2.msra.mxu0 0.0
  %197 = vmatprep.subr.mxu0 0.0
  %198 = vmatpush2.msra.mxu0 0.0
  %199 = vmatprep.subr.mxu0 0.0
  %200 = vmatpush2.msra.mxu0 0.0
  %201 = vmatprep.subr.mxu0 0.0
  %202 = vmatpush2.msra.mxu0 0.0
  %203 = vmatprep.subr.mxu0 0.0
  %204 = vmatpush2.msra.mxu0 0.0
  %205 = vmatprep.subr.mxu0 0.0
  %206 = vmatpush2.msra.mxu0 0.0
  %207 = vmatprep.subr.mxu0 0.0
  %208 = vmatpush2.msra.mxu0 0.0
  %209 = vmatprep.subr.mxu0 0.0
  %210 = vmatpush2.msra.mxu0 0.0
  %211 = vmatprep.subr.mxu0 0.0
  %212 = vmatpush2.msra.mxu0 0.0
  %213 = vmatprep.subr.mxu0 0.0
  %214 = vmatpush2.msra.mxu0 0.0
  %215 = vmatprep.subr.mxu0 0.0
  %216 = vmatpush2.msra.mxu0 0.0
  %217 = vmatprep.subr.mxu0 0.0
  %218 = vmatpush2.msra.mxu0 0.0
  %219 = vmatprep.mubr.f32.mxu0 0.0
  %220 = vmatmul.mubr.f32.gmra.mxu0 %v153
  %v221 = vpop.f32.mrf.mxu0
  %v222 = vadd.f32 0.0, %v221
  %v223 = vpop.f32.mrf.mxu0
  %v224 = vadd.f32 0.0, %v223
  %225 = vdwg.mxu0
  %227 = vrot.lane.b32.xlu0 %v222, 80
  %v228 = vpop.permute.xlu0 %227
  %v229 = vsel %vm151, %v222, 0
  %v231 = vsel %vm151, %v228, 0
  %233 = vmatprep.subr.mxu0 0.0
  %234 = vmatpush1.xpose.msra.mxu0 0.0
  %235 = vmatprep.subr.mxu0 0.0
  %236 = vmatpush1.xpose.msra.mxu0 0.0
  %237 = vmatprep.subr.mxu0 0.0
  %238 = vmatpush1.xpose.msra.mxu0 0.0
  %239 = vmatprep.subr.mxu0 0.0
  %240 = vmatpush1.xpose.msra.mxu0 0.0
  %241 = vmatprep.subr.mxu0 0.0
  %242 = vmatpush1.xpose.msra.mxu0 0.0
  %243 = vmatprep.subr.mxu0 0.0
  %244 = vmatpush1.xpose.msra.mxu0 0.0
  %245 = vmatprep.subr.mxu0 0.0
  %246 = vmatpush1.xpose.msra.mxu0 0.0
  %247 = vmatprep.subr.mxu0 0.0
  %248 = vmatpush1.xpose.msra.mxu0 0.0
  %249 = vmatprep.subr.mxu0 0.0
  %250 = vmatpush1.xpose.msra.mxu0 0.0
  %251 = vmatprep.subr.mxu0 0.0
  %252 = vmatpush1.xpose.msra.mxu0 0.0
  %253 = vmatprep.subr.mxu0 0.0
  %254 = vmatpush1.xpose.msra.mxu0 0.0
  %255 = vmatprep.subr.mxu0 0.0
  %256 = vmatpush1.xpose.msra.mxu0 0.0
  %257 = vmatprep.subr.mxu0 0.0
  %258 = vmatpush1.xpose.msra.mxu0 0.0
  %259 = vmatprep.subr.mxu0 0.0
  %260 = vmatpush1.xpose.msra.mxu0 0.0
  %261 = vmatprep.subr.mxu0 0.0
  %262 = vmatpush1.xpose.msra.mxu0 0.0
  %263 = vmatprep.subr.mxu0 0.0
  %264 = vmatpush1.xpose.msra.mxu0 %v231
  %265 = vmatprep.subr.mxu0 0.0
  %266 = vmatpush2.xpose.msra.mxu0 0.0
  %267 = vmatprep.subr.mxu0 0.0
  %268 = vmatpush2.xpose.msra.mxu0 0.0
  %269 = vmatprep.subr.mxu0 0.0
  %270 = vmatpush2.xpose.msra.mxu0 0.0
  %271 = vmatprep.subr.mxu0 0.0
  %272 = vmatpush2.xpose.msra.mxu0 0.0
  %273 = vmatprep.subr.mxu0 0.0
  %274 = vmatpush2.xpose.msra.mxu0 0.0
  %275 = vmatprep.subr.mxu0 0.0
  %276 = vmatpush2.xpose.msra.mxu0 0.0
  %277 = vmatprep.subr.mxu0 0.0
  %278 = vmatpush2.xpose.msra.mxu0 0.0
  %279 = vmatprep.subr.mxu0 0.0
  %280 = vmatpush2.xpose.msra.mxu0 0.0
  %281 = vmatprep.subr.mxu0 0.0
  %282 = vmatpush2.xpose.msra.mxu0 0.0
  %283 = vmatprep.subr.mxu0 0.0
  %284 = vmatpush2.xpose.msra.mxu0 0.0
  %285 = vmatprep.subr.mxu0 0.0
  %286 = vmatpush2.xpose.msra.mxu0 0.0
  %287 = vmatprep.subr.mxu0 0.0
  %288 = vmatpush2.xpose.msra.mxu0 0.0
  %289 = vmatprep.subr.mxu0 0.0
  %290 = vmatpush2.xpose.msra.mxu0 0.0
  %291 = vmatprep.subr.mxu0 0.0
  %292 = vmatpush2.xpose.msra.mxu0 0.0
  %293 = vmatprep.subr.mxu0 0.0
  %294 = vmatpush2.xpose.msra.mxu0 0.0
  %295 = vmatprep.subr.mxu0 0.0
  %296 = vmatpush2.xpose.msra.mxu0 0.0
  %297 = vmatprep.mubr.f32.mxu0 0.0
  %298 = vmatmul.mubr.f32.gmra.mxu0 %v229
  %v299 = vpop.f32.mrf.mxu0
  %v300 = vadd.f32 0.0, %v299
  %v301 = vpop.f32.mrf.mxu0
  %302 = vdwg.mxu0
  %vm303 = vcmask 18432
  %v304 = vsel %vm303, %v300, -inf
  %305 = vmax.xlane.f32.xlu0 %v304
  %v306 = vpop.xlane.xlu0 %305
  %v307 = vsub.f32 %v300, %v306
  %v308 = vmul.f32 %v307, 1.442695
  %v309 = vpow.pop %v308
  %v310 = vsel %vm303, %v309, 0.0
  %311 = vadd.xlane.f32.xlu0 %v310
  %v312 = vpop.xlane.xlu0 %311
  %v313 = vrcp.pop %v312
  %v314 = vmul.f32 %v309, %v313
  %315 = vrot.lane.b32.xlu0 %v222, 32
  %v316 = vpop.permute.xlu0 %315
  %vm317 = vcmask 23552
  %v319 = vsel %vm317, %v314, 0
  %vm321 = vcmask 1042432
  %v322 = vsel %vm321, %v316, 0
  %324 = vmatprep.subr.mxu0 0.0
  %325 = vmatpush1.msra.mxu0 0.0
  %326 = vmatprep.subr.mxu0 0.0
  %327 = vmatpush1.msra.mxu0 0.0
  %328 = vmatprep.subr.mxu0 0.0
  %329 = vmatpush1.msra.mxu0 0.0
  %330 = vmatprep.subr.mxu0 0.0
  %331 = vmatpush1.msra.mxu0 0.0
  %332 = vmatprep.subr.mxu0 0.0
  %333 = vmatpush1.msra.mxu0 0.0
  %334 = vmatprep.subr.mxu0 0.0
  %335 = vmatpush1.msra.mxu0 0.0
  %336 = vmatprep.subr.mxu0 0.0
  %337 = vmatpush1.msra.mxu0 0.0
  %338 = vmatprep.subr.mxu0 0.0
  %339 = vmatpush1.msra.mxu0 0.0
  %340 = vmatprep.subr.mxu0 0.0
  %341 = vmatpush1.msra.mxu0 0.0
  %342 = vmatprep.subr.mxu0 0.0
  %343 = vmatpush1.msra.mxu0 0.0
  %344 = vmatprep.subr.mxu0 0.0
  %345 = vmatpush1.msra.mxu0 0.0
  %346 = vmatprep.subr.mxu0 0.0
  %347 = vmatpush1.msra.mxu0 0.0
  %348 = vmatprep.subr.mxu0 0.0
  %349 = vmatpush1.msra.mxu0 0.0
  %350 = vmatprep.subr.mxu0 0.0
  %351 = vmatpush1.msra.mxu0 0.0
  %352 = vmatprep.subr.mxu0 0.0
  %353 = vmatpush1.msra.mxu0 0.0
  %354 = vmatprep.subr.mxu0 0.0
  %355 = vmatpush1.msra.mxu0 %v322
  %356 = vmatprep.subr.mxu0 0.0
  %357 = vmatpush2.msra.mxu0 0.0
  %358 = vmatprep.subr.mxu0 0.0
  %359 = vmatpush2.msra.mxu0 0.0
  %360 = vmatprep.subr.mxu0 0.0
  %361 = vmatpush2.msra.mxu0 0.0
  %362 = vmatprep.subr.mxu0 0.0
  %363 = vmatpush2.msra.mxu0 0.0
  %364 = vmatprep.subr.mxu0 0.0
  %365 = vmatpush2.msra.mxu0 0.0
  %366 = vmatprep.subr.mxu0 0.0
  %367 = vmatpush2.msra.mxu0 0.0
  %368 = vmatprep.subr.mxu0 0.0
  %369 = vmatpush2.msra.mxu0 0.0
  %370 = vmatprep.subr.mxu0 0.0
  %371 = vmatpush2.msra.mxu0 0.0
  %372 = vmatprep.subr.mxu0 0.0
  %373 = vmatpush2.msra.mxu0 0.0
  %374 = vmatprep.subr.mxu0 0.0
  %375 = vmatpush2.msra.mxu0 0.0
  %376 = vmatprep.subr.mxu0 0.0
  %377 = vmatpush2.msra.mxu0 0.0
  %378 = vmatprep.subr.mxu0 0.0
  %379 = vmatpush2.msra.mxu0 0.0
  %380 = vmatprep.subr.mxu0 0.0
  %381 = vmatpush2.msra.mxu0 0.0
  %382 = vmatprep.subr.mxu0 0.0
  %383 = vmatpush2.msra.mxu0 0.0
  %384 = vmatprep.subr.mxu0 0.0
  %385 = vmatpush2.msra.mxu0 0.0
  %386 = vmatprep.subr.mxu0 0.0
  %387 = vmatpush2.msra.mxu0 0.0
  %388 = vmatprep.mubr.f32.mxu0 0.0
  %389 = vmatmul.mubr.f32.gmra.mxu0 %v319
  %v390 = vpop.f32.mrf.mxu0
  %v391 = vadd.f32 0.0, %v390
  %v392 = vpop.f32.mrf.mxu0
  %393 = vdwg.mxu0
  %394 = vrot.lane.b32.xlu0 %v222, 112
  %v395 = vpop.permute.xlu0 %394
  %396 = vrot.lane.b32.xlu0 %v222, 64
  %v397 = vpop.permute.xlu0 %396
  %v398 = vsel %vm151, %v395, 0
  %v400 = vsel %vm151, %v397, 0
  %402 = vmatprep.subr.mxu0 0.0
  %403 = vmatpush1.xpose.msra.mxu0 0.0
  %404 = vmatprep.subr.mxu0 0.0
  %405 = vmatpush1.xpose.msra.mxu0 0.0
  %406 = vmatprep.subr.mxu0 0.0
  %407 = vmatpush1.xpose.msra.mxu0 0.0
  %408 = vmatprep.subr.mxu0 0.0
  %409 = vmatpush1.xpose.msra.mxu0 0.0
  %410 = vmatprep.subr.mxu0 0.0
  %411 = vmatpush1.xpose.msra.mxu0 0.0
  %412 = vmatprep.subr.mxu0 0.0
  %413 = vmatpush1.xpose.msra.mxu0 0.0
  %414 = vmatprep.subr.mxu0 0.0
  %415 = vmatpush1.xpose.msra.mxu0 0.0
  %416 = vmatprep.subr.mxu0 0.0
  %417 = vmatpush1.xpose.msra.mxu0 0.0
  %418 = vmatprep.subr.mxu0 0.0
  %419 = vmatpush1.xpose.msra.mxu0 0.0
  %420 = vmatprep.subr.mxu0 0.0
  %421 = vmatpush1.xpose.msra.mxu0 0.0
  %422 = vmatprep.subr.mxu0 0.0
  %423 = vmatpush1.xpose.msra.mxu0 0.0
  %424 = vmatprep.subr.mxu0 0.0
  %425 = vmatpush1.xpose.msra.mxu0 0.0
  %426 = vmatprep.subr.mxu0 0.0
  %427 = vmatpush1.xpose.msra.mxu0 0.0
  %428 = vmatprep.subr.mxu0 0.0
  %429 = vmatpush1.xpose.msra.mxu0 0.0
  %430 = vmatprep.subr.mxu0 0.0
  %431 = vmatpush1.xpose.msra.mxu0 0.0
  %432 = vmatprep.subr.mxu0 0.0
  %433 = vmatpush1.xpose.msra.mxu0 %v400
  %434 = vmatprep.subr.mxu0 0.0
  %435 = vmatpush2.xpose.msra.mxu0 0.0
  %436 = vmatprep.subr.mxu0 0.0
  %437 = vmatpush2.xpose.msra.mxu0 0.0
  %438 = vmatprep.subr.mxu0 0.0
  %439 = vmatpush2.xpose.msra.mxu0 0.0
  %440 = vmatprep.subr.mxu0 0.0
  %441 = vmatpush2.xpose.msra.mxu0 0.0
  %442 = vmatprep.subr.mxu0 0.0
  %443 = vmatpush2.xpose.msra.mxu0 0.0
  %444 = vmatprep.subr.mxu0 0.0
  %445 = vmatpush2.xpose.msra.mxu0 0.0
  %446 = vmatprep.subr.mxu0 0.0
  %447 = vmatpush2.xpose.msra.mxu0 0.0
  %448 = vmatprep.subr.mxu0 0.0
  %449 = vmatpush2.xpose.msra.mxu0 0.0
  %450 = vmatprep.subr.mxu0 0.0
  %451 = vmatpush2.xpose.msra.mxu0 0.0
  %452 = vmatprep.subr.mxu0 0.0
  %453 = vmatpush2.xpose.msra.mxu0 0.0
  %454 = vmatprep.subr.mxu0 0.0
  %455 = vmatpush2.xpose.msra.mxu0 0.0
  %456 = vmatprep.subr.mxu0 0.0
  %457 = vmatpush2.xpose.msra.mxu0 0.0
  %458 = vmatprep.subr.mxu0 0.0
  %459 = vmatpush2.xpose.msra.mxu0 0.0
  %460 = vmatprep.subr.mxu0 0.0
  %461 = vmatpush2.xpose.msra.mxu0 0.0
  %462 = vmatprep.subr.mxu0 0.0
  %463 = vmatpush2.xpose.msra.mxu0 0.0
  %464 = vmatprep.subr.mxu0 0.0
  %465 = vmatpush2.xpose.msra.mxu0 0.0
  %466 = vmatprep.mubr.f32.mxu0 0.0
  %467 = vmatmul.mubr.f32.gmra.mxu0 %v398
  %v468 = vpop.f32.mrf.mxu0
  %v469 = vadd.f32 0.0, %v468
  %v470 = vpop.f32.mrf.mxu0
  %471 = vdwg.mxu0
  %v472 = vsel %vm303, %v469, -inf
  %473 = vmax.xlane.f32.xlu0 %v472
  %v474 = vpop.xlane.xlu0 %473
  %v475 = vsub.f32 %v469, %v474
  %v476 = vmul.f32 %v475, 1.442695
  %v477 = vpow.pop %v476
  %v478 = vsel %vm303, %v477, 0.0
  %479 = vadd.xlane.f32.xlu0 %v478
  %v480 = vpop.xlane.xlu0 %479
  %v481 = vrcp.pop %v480
  %v482 = vmul.f32 %v477, %v481
  %483 = vrot.lane.b32.xlu0 %v222, 16
  %v484 = vpop.permute.xlu0 %483
  %v486 = vsel %vm317, %v482, 0
  %v488 = vsel %vm321, %v484, 0
  %490 = vmatprep.subr.mxu0 0.0
  %491 = vmatpush1.msra.mxu0 0.0
  %492 = vmatprep.subr.mxu0 0.0
  %493 = vmatpush1.msra.mxu0 0.0
  %494 = vmatprep.subr.mxu0 0.0
  %495 = vmatpush1.msra.mxu0 0.0
  %496 = vmatprep.subr.mxu0 0.0
  %497 = vmatpush1.msra.mxu0 0.0
  %498 = vmatprep.subr.mxu0 0.0
  %499 = vmatpush1.msra.mxu0 0.0
  %500 = vmatprep.subr.mxu0 0.0
  %501 = vmatpush1.msra.mxu0 0.0
  %502 = vmatprep.subr.mxu0 0.0
  %503 = vmatpush1.msra.mxu0 0.0
  %504 = vmatprep.subr.mxu0 0.0
  %505 = vmatpush1.msra.mxu0 0.0
  %506 = vmatprep.subr.mxu0 0.0
  %507 = vmatpush1.msra.mxu0 0.0
  %508 = vmatprep.subr.mxu0 0.0
  %509 = vmatpush1.msra.mxu0 0.0
  %510 = vmatprep.subr.mxu0 0.0
  %511 = vmatpush1.msra.mxu0 0.0
  %512 = vmatprep.subr.mxu0 0.0
  %513 = vmatpush1.msra.mxu0 0.0
  %514 = vmatprep.subr.mxu0 0.0
  %515 = vmatpush1.msra.mxu0 0.0
  %516 = vmatprep.subr.mxu0 0.0
  %517 = vmatpush1.msra.mxu0 0.0
  %518 = vmatprep.subr.mxu0 0.0
  %519 = vmatpush1.msra.mxu0 0.0
  %520 = vmatprep.subr.mxu0 0.0
  %521 = vmatpush1.msra.mxu0 %v488
  %522 = vmatprep.subr.mxu0 0.0
  %523 = vmatpush2.msra.mxu0 0.0
  %524 = vmatprep.subr.mxu0 0.0
  %525 = vmatpush2.msra.mxu0 0.0
  %526 = vmatprep.subr.mxu0 0.0
  %527 = vmatpush2.msra.mxu0 0.0
  %528 = vmatprep.subr.mxu0 0.0
  %529 = vmatpush2.msra.mxu0 0.0
  %530 = vmatprep.subr.mxu0 0.0
  %531 = vmatpush2.msra.mxu0 0.0
  %532 = vmatprep.subr.mxu0 0.0
  %533 = vmatpush2.msra.mxu0 0.0
  %534 = vmatprep.subr.mxu0 0.0
  %535 = vmatpush2.msra.mxu0 0.0
  %536 = vmatprep.subr.mxu0 0.0
  %537 = vmatpush2.msra.mxu0 0.0
  %538 = vmatprep.subr.mxu0 0.0
  %539 = vmatpush2.msra.mxu0 0.0
  %540 = vmatprep.subr.mxu0 0.0
  %541 = vmatpush2.msra.mxu0 0.0
  %542 = vmatprep.subr.mxu0 0.0
  %543 = vmatpush2.msra.mxu0 0.0
  %544 = vmatprep.subr.mxu0 0.0
  %545 = vmatpush2.msra.mxu0 0.0
  %546 = vmatprep.subr.mxu0 0.0
  %547 = vmatpush2.msra.mxu0 0.0
  %548 = vmatprep.subr.mxu0 0.0
  %549 = vmatpush2.msra.mxu0 0.0
  %550 = vmatprep.subr.mxu0 0.0
  %551 = vmatpush2.msra.mxu0 0.0
  %552 = vmatprep.subr.mxu0 0.0
  %553 = vmatpush2.msra.mxu0 0.0
  %554 = vmatprep.mubr.f32.mxu0 0.0
  %555 = vmatmul.mubr.f32.gmra.mxu0 %v486
  %v556 = vpop.f32.mrf.mxu0
  %v557 = vadd.f32 0.0, %v556
  %v558 = vpop.f32.mrf.mxu0
  %559 = vdwg.mxu0
  %560 = vrot.lane.b32.xlu0 %v222, 96
  %v561 = vpop.permute.xlu0 %560
  %562 = vrot.lane.b32.xlu0 %v222, 48
  %v563 = vpop.permute.xlu0 %562
  %v564 = vsel %vm151, %v561, 0
  %v566 = vsel %vm151, %v563, 0
  %568 = vmatprep.subr.mxu0 0.0
  %569 = vmatpush1.xpose.msra.mxu0 0.0
  %570 = vmatprep.subr.mxu0 0.0
  %571 = vmatpush1.xpose.msra.mxu0 0.0
  %572 = vmatprep.subr.mxu0 0.0
  %573 = vmatpush1.xpose.msra.mxu0 0.0
  %574 = vmatprep.subr.mxu0 0.0
  %575 = vmatpush1.xpose.msra.mxu0 0.0
  %576 = vmatprep.subr.mxu0 0.0
  %577 = vmatpush1.xpose.msra.mxu0 0.0
  %578 = vmatprep.subr.mxu0 0.0
  %579 = vmatpush1.xpose.msra.mxu0 0.0
  %580 = vmatprep.subr.mxu0 0.0
  %581 = vmatpush1.xpose.msra.mxu0 0.0
  %582 = vmatprep.subr.mxu0 0.0
  %583 = vmatpush1.xpose.msra.mxu0 0.0
  %584 = vmatprep.subr.mxu0 0.0
  %585 = vmatpush1.xpose.msra.mxu0 0.0
  %586 = vmatprep.subr.mxu0 0.0
  %587 = vmatpush1.xpose.msra.mxu0 0.0
  %588 = vmatprep.subr.mxu0 0.0
  %589 = vmatpush1.xpose.msra.mxu0 0.0
  %590 = vmatprep.subr.mxu0 0.0
  %591 = vmatpush1.xpose.msra.mxu0 0.0
  %592 = vmatprep.subr.mxu0 0.0
  %593 = vmatpush1.xpose.msra.mxu0 0.0
  %594 = vmatprep.subr.mxu0 0.0
  %595 = vmatpush1.xpose.msra.mxu0 0.0
  %596 = vmatprep.subr.mxu0 0.0
  %597 = vmatpush1.xpose.msra.mxu0 0.0
  %598 = vmatprep.subr.mxu0 0.0
  %599 = vmatpush1.xpose.msra.mxu0 %v566
  %600 = vmatprep.subr.mxu0 0.0
  %601 = vmatpush2.xpose.msra.mxu0 0.0
  %602 = vmatprep.subr.mxu0 0.0
  %603 = vmatpush2.xpose.msra.mxu0 0.0
  %604 = vmatprep.subr.mxu0 0.0
  %605 = vmatpush2.xpose.msra.mxu0 0.0
  %606 = vmatprep.subr.mxu0 0.0
  %607 = vmatpush2.xpose.msra.mxu0 0.0
  %608 = vmatprep.subr.mxu0 0.0
  %609 = vmatpush2.xpose.msra.mxu0 0.0
  %610 = vmatprep.subr.mxu0 0.0
  %611 = vmatpush2.xpose.msra.mxu0 0.0
  %612 = vmatprep.subr.mxu0 0.0
  %613 = vmatpush2.xpose.msra.mxu0 0.0
  %614 = vmatprep.subr.mxu0 0.0
  %615 = vmatpush2.xpose.msra.mxu0 0.0
  %616 = vmatprep.subr.mxu0 0.0
  %617 = vmatpush2.xpose.msra.mxu0 0.0
  %618 = vmatprep.subr.mxu0 0.0
  %619 = vmatpush2.xpose.msra.mxu0 0.0
  %620 = vmatprep.subr.mxu0 0.0
  %621 = vmatpush2.xpose.msra.mxu0 0.0
  %622 = vmatprep.subr.mxu0 0.0
  %623 = vmatpush2.xpose.msra.mxu0 0.0
  %624 = vmatprep.subr.mxu0 0.0
  %625 = vmatpush2.xpose.msra.mxu0 0.0
  %626 = vmatprep.subr.mxu0 0.0
  %627 = vmatpush2.xpose.msra.mxu0 0.0
  %628 = vmatprep.subr.mxu0 0.0
  %629 = vmatpush2.xpose.msra.mxu0 0.0
  %630 = vmatprep.subr.mxu0 0.0
  %631 = vmatpush2.xpose.msra.mxu0 0.0
  %632 = vmatprep.mubr.f32.mxu0 0.0
  %633 = vmatmul.mubr.f32.gmra.mxu0 %v564
  %v634 = vpop.f32.mrf.mxu0
  %v635 = vadd.f32 0.0, %v634
  %v636 = vpop.f32.mrf.mxu0
  %637 = vdwg.mxu0
  %v638 = vsel %vm303, %v635, -inf
  %639 = vmax.xlane.f32.xlu0 %v638
  %v640 = vpop.xlane.xlu0 %639
  %v641 = vsub.f32 %v635, %v640
  %v642 = vmul.f32 %v641, 1.442695
  %v643 = vpow.pop %v642
  %v644 = vsel %vm303, %v643, 0.0
  %645 = vadd.xlane.f32.xlu0 %v644
  %v646 = vpop.xlane.xlu0 %645
  %v647 = vrcp.pop %v646
  %v648 = vmul.f32 %v643, %v647
  %v650 = vsel %vm317, %v648, 0
  %v653 = vsel %vm321, %v224, 0
  %655 = vmatprep.subr.mxu0 0.0
  %656 = vmatpush1.msra.mxu0 0.0
  %657 = vmatprep.subr.mxu0 0.0
  %658 = vmatpush1.msra.mxu0 0.0
  %659 = vmatprep.subr.mxu0 0.0
  %660 = vmatpush1.msra.mxu0 0.0
  %661 = vmatprep.subr.mxu0 0.0
  %662 = vmatpush1.msra.mxu0 0.0
  %663 = vmatprep.subr.mxu0 0.0
  %664 = vmatpush1.msra.mxu0 0.0
  %665 = vmatprep.subr.mxu0 0.0
  %666 = vmatpush1.msra.mxu0 0.0
  %667 = vmatprep.subr.mxu0 0.0
  %668 = vmatpush1.msra.mxu0 0.0
  %669 = vmatprep.subr.mxu0 0.0
  %670 = vmatpush1.msra.mxu0 0.0
  %671 = vmatprep.subr.mxu0 0.0
  %672 = vmatpush1.msra.mxu0 0.0
  %673 = vmatprep.subr.mxu0 0.0
  %674 = vmatpush1.msra.mxu0 0.0
  %675 = vmatprep.subr.mxu0 0.0
  %676 = vmatpush1.msra.mxu0 0.0
  %677 = vmatprep.subr.mxu0 0.0
  %678 = vmatpush1.msra.mxu0 0.0
  %679 = vmatprep.subr.mxu0 0.0
  %680 = vmatpush1.msra.mxu0 0.0
  %681 = vmatprep.subr.mxu0 0.0
  %682 = vmatpush1.msra.mxu0 0.0
  %683 = vmatprep.subr.mxu0 0.0
  %684 = vmatpush1.msra.mxu0 0.0
  %685 = vmatprep.subr.mxu0 0.0
  %686 = vmatpush1.msra.mxu0 %v653
  %687 = vmatprep.subr.mxu0 0.0
  %688 = vmatpush2.msra.mxu0 0.0
  %689 = vmatprep.subr.mxu0 0.0
  %690 = vmatpush2.msra.mxu0 0.0
  %691 = vmatprep.subr.mxu0 0.0
  %692 = vmatpush2.msra.mxu0 0.0
  %693 = vmatprep.subr.mxu0 0.0
  %694 = vmatpush2.msra.mxu0 0.0
  %695 = vmatprep.subr.mxu0 0.0
  %696 = vmatpush2.msra.mxu0 0.0
  %697 = vmatprep.subr.mxu0 0.0
  %698 = vmatpush2.msra.mxu0 0.0
  %699 = vmatprep.subr.mxu0 0.0
  %700 = vmatpush2.msra.mxu0 0.0
  %701 = vmatprep.subr.mxu0 0.0
  %702 = vmatpush2.msra.mxu0 0.0
  %703 = vmatprep.subr.mxu0 0.0
  %704 = vmatpush2.msra.mxu0 0.0
  %705 = vmatprep.subr.mxu0 0.0
  %706 = vmatpush2.msra.mxu0 0.0
  %707 = vmatprep.subr.mxu0 0.0
  %708 = vmatpush2.msra.mxu0 0.0
  %709 = vmatprep.subr.mxu0 0.0
  %710 = vmatpush2.msra.mxu0 0.0
  %711 = vmatprep.subr.mxu0 0.0
  %712 = vmatpush2.msra.mxu0 0.0
  %713 = vmatprep.subr.mxu0 0.0
  %714 = vmatpush2.msra.mxu0 0.0
  %715 = vmatprep.subr.mxu0 0.0
  %716 = vmatpush2.msra.mxu0 0.0
  %717 = vmatprep.subr.mxu0 0.0
  %718 = vmatpush2.msra.mxu0 0.0
  %719 = vmatprep.mubr.f32.mxu0 0.0
  %720 = vmatmul.mubr.f32.gmra.mxu0 %v650
  %v721 = vpop.f32.mrf.mxu0
  %v722 = vadd.f32 0.0, %v721
  %v723 = vpop.f32.mrf.mxu0
  %724 = vdwg.mxu0
  %726 = vrot.lane.b32.xlu0 %v557, 16
  %v727 = vpop.permute.xlu0 %726
  %730 = vrot.lane.b32.xlu0 %v722, 32
  %v731 = vpop.permute.xlu0 %730
  %v733 = vsel %vm151, %v391, %v727
  %v734 = vsel %vm29, %v733, %v731
  %v735 = vlaneseq
  %v736 = vshrl.u32 %v735, 7
  %v737 = vsub.s32 4, %v736
  %v738 = vrot.slane %v103, %v737
  %vm739 = vcmask 392192
  %v741 = vsel %vm739, %v734, 0
  %743 = vmatprep.subr.mxu0 0.0
  %744 = vmatpush1.msra.mxu0 0.0
  %745 = vmatprep.subr.mxu0 0.0
  %746 = vmatpush1.msra.mxu0 0.0
  %747 = vmatprep.subr.mxu0 0.0
  %748 = vmatpush1.msra.mxu0 0.0
  %749 = vmatprep.subr.mxu0 0.0
  %750 = vmatpush1.msra.mxu0 0.0
  %751 = vmatprep.subr.mxu0 0.0
  %752 = vmatpush1.msra.mxu0 0.0
  %753 = vmatprep.subr.mxu0 0.0
  %754 = vmatpush1.msra.mxu0 0.0
  %755 = vmatprep.subr.mxu0 0.0
  %756 = vmatpush1.msra.mxu0 0.0
  %757 = vmatprep.subr.mxu0 0.0
  %758 = vmatpush1.msra.mxu0 0.0
  %759 = vmatprep.subr.mxu0 0.0
  %760 = vmatpush1.msra.mxu0 0.0
  %761 = vmatprep.subr.mxu0 0.0
  %762 = vmatpush1.msra.mxu0 0.0
  %763 = vmatprep.subr.mxu0 0.0
  %764 = vmatpush1.msra.mxu0 %v115
  %765 = vmatprep.subr.mxu0 0.0
  %766 = vmatpush1.msra.mxu0 %v114
  %767 = vmatprep.subr.mxu0 0.0
  %768 = vmatpush1.msra.mxu0 %v113
  %769 = vmatprep.subr.mxu0 0.0
  %770 = vmatpush1.msra.mxu0 %v112
  %771 = vmatprep.subr.mxu0 0.0
  %772 = vmatpush1.msra.mxu0 %v111
  %773 = vmatprep.subr.mxu0 0.0
  %774 = vmatpush1.msra.mxu0 %v110
  %775 = vmatprep.subr.mxu0 0.0
  %776 = vmatpush2.msra.mxu0 0.0
  %777 = vmatprep.subr.mxu0 0.0
  %778 = vmatpush2.msra.mxu0 0.0
  %779 = vmatprep.subr.mxu0 0.0
  %780 = vmatpush2.msra.mxu0 0.0
  %781 = vmatprep.subr.mxu0 0.0
  %782 = vmatpush2.msra.mxu0 0.0
  %783 = vmatprep.subr.mxu0 0.0
  %784 = vmatpush2.msra.mxu0 0.0
  %785 = vmatprep.subr.mxu0 0.0
  %786 = vmatpush2.msra.mxu0 0.0
  %787 = vmatprep.subr.mxu0 0.0
  %788 = vmatpush2.msra.mxu0 0.0
  %789 = vmatprep.subr.mxu0 0.0
  %790 = vmatpush2.msra.mxu0 0.0
  %791 = vmatprep.subr.mxu0 0.0
  %792 = vmatpush2.msra.mxu0 0.0
  %793 = vmatprep.subr.mxu0 0.0
  %794 = vmatpush2.msra.mxu0 0.0
  %795 = vmatprep.subr.mxu0 0.0
  %796 = vmatpush2.msra.mxu0 0.0
  %797 = vmatprep.subr.mxu0 0.0
  %798 = vmatpush2.msra.mxu0 0.0
  %799 = vmatprep.subr.mxu0 0.0
  %800 = vmatpush2.msra.mxu0 0.0
  %801 = vmatprep.subr.mxu0 0.0
  %802 = vmatpush2.msra.mxu0 0.0
  %803 = vmatprep.subr.mxu0 0.0
  %804 = vmatpush2.msra.mxu0 0.0
  %805 = vmatprep.subr.mxu0 0.0
  %806 = vmatpush2.msra.mxu0 0.0
  %807 = vmatprep.mubr.f32.mxu0 0.0
  %808 = vmatmul.mubr.f32.gmra.mxu0 %v741
  %v809 = vpop.f32.mrf.mxu0
  %v810 = vadd.f32 %v738, %v809
  %v811 = vpop.f32.mrf.mxu0
  %812 = vdwg.mxu0
  %v813 = vadd.f32 %v810, %v100
  %v814 = vsel %vm124, %v813, 0.0
  %815 = vadd.xlane.f32.xlu0 %v814
  %v816 = vpop.xlane.xlu0 %815
  %v817 = vmul.f32 %v816, %v128
  %v818 = vmul.f32 %v813, %v813
  %v819 = vsel %vm124, %v818, 0.0
  %820 = vadd.xlane.f32.xlu0 %v819
  %v821 = vpop.xlane.xlu0 %820
  %v822 = vmul.f32 %v821, %v128
  %v823 = vmul.f32 %v817, %v817
  %v824 = vsub.f32 %v822, %v823
  %v825 = vsub.f32 %v813, %v817
  %v826 = vadd.f32 %v824, 1e-05
  %v827 = vrsqrt.pop %v826
  %v828 = vmul.f32 %v825, %v827
  %v829 = vlaneseq
  %v830 = vshrl.u32 %v829, 7
  %v831 = vsub.s32 2, %v830
  %v832 = vrot.slane %v103, %v831
  %v833 = vmul.f32 %v828, %v832
  %v834 = vlaneseq
  %v835 = vshrl.u32 %v834, 7
  %v836 = vsub.s32 3, %v835
  %v837 = vrot.slane %v103, %v836
  %v838 = vadd.f32 %v833, %v837
  %v839 = vlaneseq
  %v840 = vshrl.u32 %v839, 7
  %v841 = vsub.s32 6, %v840
  %v842 = vrot.slane %v103, %v841
  %v844 = vsel %vm151, %v838, 0
  %846 = vmatprep.subr.mxu0 0.0
  %847 = vmatpush1.msra.mxu0 0.0
  %848 = vmatprep.subr.mxu0 0.0
  %849 = vmatpush1.msra.mxu0 0.0
  %850 = vmatprep.subr.mxu0 0.0
  %851 = vmatpush1.msra.mxu0 0.0
  %852 = vmatprep.subr.mxu0 0.0
  %853 = vmatpush1.msra.mxu0 0.0
  %854 = vmatprep.subr.mxu0 0.0
  %855 = vmatpush1.msra.mxu0 0.0
  %856 = vmatprep.subr.mxu0 0.0
  %857 = vmatpush1.msra.mxu0 0.0
  %858 = vmatprep.subr.mxu0 0.0
  %859 = vmatpush1.msra.mxu0 0.0
  %860 = vmatprep.subr.mxu0 0.0
  %861 = vmatpush1.msra.mxu0 0.0
  %862 = vmatprep.subr.mxu0 0.0
  %863 = vmatpush1.msra.mxu0 0.0
  %864 = vmatprep.subr.mxu0 0.0
  %865 = vmatpush1.msra.mxu0 0.0
  %866 = vmatprep.subr.mxu0 0.0
  %867 = vmatpush1.msra.mxu0 0.0
  %868 = vmatprep.subr.mxu0 0.0
  %869 = vmatpush1.msra.mxu0 0.0
  %870 = vmatprep.subr.mxu0 0.0
  %871 = vmatpush1.msra.mxu0 0.0
  %872 = vmatprep.subr.mxu0 0.0
  %873 = vmatpush1.msra.mxu0 0.0
  %874 = vmatprep.subr.mxu0 0.0
  %875 = vmatpush1.msra.mxu0 %v105
  %876 = vmatprep.subr.mxu0 0.0
  %877 = vmatpush1.msra.mxu0 %v104
  %878 = vmatprep.subr.mxu0 0.0
  %879 = vmatpush2.msra.mxu0 0.0
  %880 = vmatprep.subr.mxu0 0.0
  %881 = vmatpush2.msra.mxu0 0.0
  %882 = vmatprep.subr.mxu0 0.0
  %883 = vmatpush2.msra.mxu0 0.0
  %884 = vmatprep.subr.mxu0 0.0
  %885 = vmatpush2.msra.mxu0 0.0
  %886 = vmatprep.subr.mxu0 0.0
  %887 = vmatpush2.msra.mxu0 0.0
  %888 = vmatprep.subr.mxu0 0.0
  %889 = vmatpush2.msra.mxu0 0.0
  %890 = vmatprep.subr.mxu0 0.0
  %891 = vmatpush2.msra.mxu0 0.0
  %892 = vmatprep.subr.mxu0 0.0
  %893 = vmatpush2.msra.mxu0 0.0
  %894 = vmatprep.subr.mxu0 0.0
  %895 = vmatpush2.msra.mxu0 0.0
  %896 = vmatprep.subr.mxu0 0.0
  %897 = vmatpush2.msra.mxu0 0.0
  %898 = vmatprep.subr.mxu0 0.0
  %899 = vmatpush2.msra.mxu0 0.0
  %900 = vmatprep.subr.mxu0 0.0
  %901 = vmatpush2.msra.mxu0 0.0
  %902 = vmatprep.subr.mxu0 0.0
  %903 = vmatpush2.msra.mxu0 0.0
  %904 = vmatprep.subr.mxu0 0.0
  %905 = vmatpush2.msra.mxu0 0.0
  %906 = vmatprep.subr.mxu0 0.0
  %907 = vmatpush2.msra.mxu0 0.0
  %908 = vmatprep.subr.mxu0 0.0
  %909 = vmatpush2.msra.mxu0 0.0
  %910 = vmatprep.mubr.f32.mxu0 0.0
  %911 = vmatmul.mubr.f32.gmra.mxu0 %v844
  %v912 = vpop.f32.mrf.mxu0
  %v913 = vadd.f32 %v842, %v912
  %v914 = vpop.f32.mrf.mxu0
  %915 = vdwg.mxu0
  %v916 = vmul.f32 %v913, 0.5
  %v917 = vmul.f32 %v913, 0.70710677
  %v918 = verf.f32.pop %v917
  %v919 = vadd.f32 %v918, 1.0
  %v920 = vmul.f32 %v916, %v919
  %v921 = vlaneseq
  %v922 = vshrl.u32 %v921, 7
  %v923 = vsub.s32 5, %v922
  %v924 = vrot.slane %v103, %v923
  %vm925 = vcmask 523264
  %v927 = vsel %vm925, %v920, 0
  %929 = vmatprep.subr.mxu0 0.0
  %930 = vmatpush1.msra.mxu0 0.0
  %931 = vmatprep.subr.mxu0 0.0
  %932 = vmatpush1.msra.mxu0 0.0
  %933 = vmatprep.subr.mxu0 0.0
  %934 = vmatpush1.msra.mxu0 0.0
  %935 = vmatprep.subr.mxu0 0.0
  %936 = vmatpush1.msra.mxu0 0.0
  %937 = vmatprep.subr.mxu0 0.0
  %938 = vmatpush1.msra.mxu0 0.0
  %939 = vmatprep.subr.mxu0 0.0
  %940 = vmatpush1.msra.mxu0 0.0
  %941 = vmatprep.subr.mxu0 0.0
  %942 = vmatpush1.msra.mxu0 0.0
  %943 = vmatprep.subr.mxu0 0.0
  %944 = vmatpush1.msra.mxu0 0.0
  %945 = vmatprep.subr.mxu0 0.0
  %946 = vmatpush1.msra.mxu0 %v123
  %947 = vmatprep.subr.mxu0 0.0
  %948 = vmatpush1.msra.mxu0 %v122
  %949 = vmatprep.subr.mxu0 0.0
  %950 = vmatpush1.msra.mxu0 %v121
  %951 = vmatprep.subr.mxu0 0.0
  %952 = vmatpush1.msra.mxu0 %v120
  %953 = vmatprep.subr.mxu0 0.0
  %954 = vmatpush1.msra.mxu0 %v119
  %955 = vmatprep.subr.mxu0 0.0
  %956 = vmatpush1.msra.mxu0 %v118
  %957 = vmatprep.subr.mxu0 0.0
  %958 = vmatpush1.msra.mxu0 %v117
  %959 = vmatprep.subr.mxu0 0.0
  %960 = vmatpush1.msra.mxu0 %v116
  %961 = vmatprep.subr.mxu0 0.0
  %962 = vmatpush2.msra.mxu0 0.0
  %963 = vmatprep.subr.mxu0 0.0
  %964 = vmatpush2.msra.mxu0 0.0
  %965 = vmatprep.subr.mxu0 0.0
  %966 = vmatpush2.msra.mxu0 0.0
  %967 = vmatprep.subr.mxu0 0.0
  %968 = vmatpush2.msra.mxu0 0.0
  %969 = vmatprep.subr.mxu0 0.0
  %970 = vmatpush2.msra.mxu0 0.0
  %971 = vmatprep.subr.mxu0 0.0
  %972 = vmatpush2.msra.mxu0 0.0
  %973 = vmatprep.subr.mxu0 0.0
  %974 = vmatpush2.msra.mxu0 0.0
  %975 = vmatprep.subr.mxu0 0.0
  %976 = vmatpush2.msra.mxu0 0.0
  %977 = vmatprep.subr.mxu0 0.0
  %978 = vmatpush2.msra.mxu0 0.0
  %979 = vmatprep.subr.mxu0 0.0
  %980 = vmatpush2.msra.mxu0 0.0
  %981 = vmatprep.subr.mxu0 0.0
  %982 = vmatpush2.msra.mxu0 0.0
  %983 = vmatprep.subr.mxu0 0.0
  %984 = vmatpush2.msra.mxu0 0.0
  %985 = vmatprep.subr.mxu0 0.0
  %986 = vmatpush2.msra.mxu0 0.0
  %987 = vmatprep.subr.mxu0 0.0
  %988 = vmatpush2.msra.mxu0 0.0
  %989 = vmatprep.subr.mxu0 0.0
  %990 = vmatpush2.msra.mxu0 0.0
  %991 = vmatprep.subr.mxu0 0.0
  %992 = vmatpush2.msra.mxu0 0.0
  %993 = vmatprep.mubr.f32.mxu0 0.0
  %994 = vmatmul.mubr.f32.gmra.mxu0 %v927
  %v995 = vpop.f32.mrf.mxu0
  %v996 = vadd.f32 %v924, %v995
  %v997 = vpop.f32.mrf.mxu0
  %998 = vdwg.mxu0
  %v999 = vadd.f32 %v996, %v813
  %s1000 = scalar_lea.vmem %s2, 24
  %v1001 = vld [vmem:[%s1000] sm:$0xff]
  %v1002 = vld [vmem:[%s1000 + $0x8] sm:$0xff]
  %v1003 = vld [vmem:[%s1000 + $0x10] sm:$0xff]
  %s1004 = scalar_lea.vmem %s3, 32
  %v1005 = vld [vmem:[%s1004] sm:$0xff]
  %v1006 = vld [vmem:[%s1004 + $0x8] sm:$0xff]
  %v1007 = vld [vmem:[%s1004 + $0x10] sm:$0xff]
  %v1008 = vld [vmem:[%s1004 + $0x18] sm:$0xff]
  %s1009 = scalar_lea.vmem %s4, 112
  %v1010 = vld [vmem:[%s1009] sm:$0xff]
  %v1011 = vld [vmem:[%s1009 + $0x8] sm:$0xff]
  %v1012 = vld [vmem:[%s1009 + $0x10] sm:$0xff]
  %v1013 = vld [vmem:[%s1009 + $0x18] sm:$0xff]
  %v1014 = vld [vmem:[%s1009 + $0x20] sm:$0xff]
  %v1015 = vld [vmem:[%s1009 + $0x28] sm:$0xff]
  %v1016 = vld [vmem:[%s1009 + $0x30] sm:$0xff]
  %v1017 = vld [vmem:[%s1009 + $0x38] sm:$0xff]
  %v1018 = vld [vmem:[%s1009 + $0x40] sm:$0xff]
  %v1019 = vld [vmem:[%s1009 + $0x48] sm:$0xff]
  %v1020 = vld [vmem:[%s1009 + $0x50] sm:$0xff]
  %v1021 = vld [vmem:[%s1009 + $0x58] sm:$0xff]
  %v1022 = vld [vmem:[%s1009 + $0x60] sm:$0xff]
  %v1023 = vld [vmem:[%s1009 + $0x68] sm:$0xff]
  %v1024 = vsel %vm124, %v999, 0.0
  %1025 = vadd.xlane.f32.xlu0 %v1024
  %v1026 = vpop.xlane.xlu0 %1025
  %v1027 = vmul.f32 %v1026, %v128
  %v1028 = vmul.f32 %v999, %v999
  %v1029 = vsel %vm124, %v1028, 0.0
  %1030 = vadd.xlane.f32.xlu0 %v1029
  %v1031 = vpop.xlane.xlu0 %1030
  %v1032 = vmul.f32 %v1031, %v128
  %v1033 = vmul.f32 %v1027, %v1027
  %v1034 = vsub.f32 %v1032, %v1033
  %v1035 = vsub.f32 %v999, %v1027
  %v1036 = vadd.f32 %v1034, 1e-05
  %v1037 = vrsqrt.pop %v1036
  %v1038 = vmul.f32 %v1035, %v1037
  %v1039 = vlaneseq
  %v1040 = vshrl.u32 %v1039, 7
  %v1041 = vsub.s32 0, %v1040
  %v1042 = vrot.slane %v1001, %v1041
  %v1043 = vmul.f32 %v1038, %v1042
  %v1044 = vlaneseq
  %v1045 = vshrl.u32 %v1044, 7
  %v1046 = vsub.s32 1, %v1045
  %v1047 = vrot.slane %v1001, %v1046
  %v1048 = vadd.f32 %v1043, %v1047
  %v1050 = vsel %vm151, %v1048, 0
  %1052 = vmatprep.subr.mxu0 0.0
  %1053 = vmatpush1.msra.mxu0 0.0
  %1054 = vmatprep.subr.mxu0 0.0
  %1055 = vmatpush1.msra.mxu0 0.0
  %1056 = vmatprep.subr.mxu0 0.0
  %1057 = vmatpush1.msra.mxu0 0.0
  %1058 = vmatprep.subr.mxu0 0.0
  %1059 = vmatpush1.msra.mxu0 0.0
  %1060 = vmatprep.subr.mxu0 0.0
  %1061 = vmatpush1.msra.mxu0 0.0
  %1062 = vmatprep.subr.mxu0 0.0
  %1063 = vmatpush1.msra.mxu0 0.0
  %1064 = vmatprep.subr.mxu0 0.0
  %1065 = vmatpush1.msra.mxu0 0.0
  %1066 = vmatprep.subr.mxu0 0.0
  %1067 = vmatpush1.msra.mxu0 0.0
  %1068 = vmatprep.subr.mxu0 0.0
  %1069 = vmatpush1.msra.mxu0 0.0
  %1070 = vmatprep.subr.mxu0 0.0
  %1071 = vmatpush1.msra.mxu0 0.0
  %1072 = vmatprep.subr.mxu0 0.0
  %1073 = vmatpush1.msra.mxu0 0.0
  %1074 = vmatprep.subr.mxu0 0.0
  %1075 = vmatpush1.msra.mxu0 0.0
  %1076 = vmatprep.subr.mxu0 0.0
  %1077 = vmatpush1.msra.mxu0 0.0
  %1078 = vmatprep.subr.mxu0 0.0
  %1079 = vmatpush1.msra.mxu0 0.0
  %1080 = vmatprep.subr.mxu0 %v1008
  %1081 = vmatpush1.msra.mxu0 %v1007
  %1082 = vmatprep.subr.mxu0 %v1006
  %1083 = vmatpush1.msra.mxu0 %v1005
  %1084 = vmatprep.subr.mxu0 0.0
  %1085 = vmatpush2.msra.mxu0 0.0
  %1086 = vmatprep.subr.mxu0 0.0
  %1087 = vmatpush2.msra.mxu0 0.0
  %1088 = vmatprep.subr.mxu0 0.0
  %1089 = vmatpush2.msra.mxu0 0.0
  %1090 = vmatprep.subr.mxu0 0.0
  %1091 = vmatpush2.msra.mxu0 0.0
  %1092 = vmatprep.subr.mxu0 0.0
  %1093 = vmatpush2.msra.mxu0 0.0
  %1094 = vmatprep.subr.mxu0 0.0
  %1095 = vmatpush2.msra.mxu0 0.0
  %1096 = vmatprep.subr.mxu0 0.0
  %1097 = vmatpush2.msra.mxu0 0.0
  %1098 = vmatprep.subr.mxu0 0.0
  %1099 = vmatpush2.msra.mxu0 0.0
  %1100 = vmatprep.subr.mxu0 0.0
  %1101 = vmatpush2.msra.mxu0 0.0
  %1102 = vmatprep.subr.mxu0 0.0
  %1103 = vmatpush2.msra.mxu0 0.0
  %1104 = vmatprep.subr.mxu0 0.0
  %1105 = vmatpush2.msra.mxu0 0.0
  %1106 = vmatprep.subr.mxu0 0.0
  %1107 = vmatpush2.msra.mxu0 0.0
  %1108 = vmatprep.subr.mxu0 0.0
  %1109 = vmatpush2.msra.mxu0 0.0
  %1110 = vmatprep.subr.mxu0 0.0
  %1111 = vmatpush2.msra.mxu0 0.0
  %1112 = vmatprep.subr.mxu0 0.0
  %1113 = vmatpush2.msra.mxu0 0.0
  %1114 = vmatprep.subr.mxu0 0.0
  %1115 = vmatpush2.msra.mxu0 0.0
  %1116 = vmatprep.mubr.f32.mxu0 0.0
  %1117 = vmatmul.mubr.f32.gmra.mxu0 %v1050
  %v1118 = vpop.f32.mrf.mxu0
  %v1119 = vadd.f32 0.0, %v1118
  %v1120 = vpop.f32.mrf.mxu0
  %v1121 = vadd.f32 0.0, %v1120
  %1122 = vdwg.mxu0
  %1124 = vrot.lane.b32.xlu0 %v1119, 80
  %v1125 = vpop.permute.xlu0 %1124
  %v1126 = vsel %vm151, %v1119, 0
  %v1128 = vsel %vm151, %v1125, 0
  %1130 = vmatprep.subr.mxu0 0.0
  %1131 = vmatpush1.xpose.msra.mxu0 0.0
  %1132 = vmatprep.subr.mxu0 0.0
  %1133 = vmatpush1.xpose.msra.mxu0 0.0
  %1134 = vmatprep.subr.mxu0 0.0
  %1135 = vmatpush1.xpose.msra.mxu0 0.0
  %1136 = vmatprep.subr.mxu0 0.0
  %1137 = vmatpush1.xpose.msra.mxu0 0.0
  %1138 = vmatprep.subr.mxu0 0.0
  %1139 = vmatpush1.xpose.msra.mxu0 0.0
  %1140 = vmatprep.subr.mxu0 0.0
  %1141 = vmatpush1.xpose.msra.mxu0 0.0
  %1142 = vmatprep.subr.mxu0 0.0
  %1143 = vmatpush1.xpose.msra.mxu0 0.0
  %1144 = vmatprep.subr.mxu0 0.0
  %1145 = vmatpush1.xpose.msra.mxu0 0.0
  %1146 = vmatprep.subr.mxu0 0.0
  %1147 = vmatpush1.xpose.msra.mxu0 0.0
  %1148 = vmatprep.subr.mxu0 0.0
  %1149 = vmatpush1.xpose.msra.mxu0 0.0
  %1150 = vmatprep.subr.mxu0 0.0
  %1151 = vmatpush1.xpose.msra.mxu0 0.0
  %1152 = vmatprep.subr.mxu0 0.0
  %1153 = vmatpush1.xpose.msra.mxu0 0.0
  %1154 = vmatprep.subr.mxu0 0.0
  %1155 = vmatpush1.xpose.msra.mxu0 0.0
  %1156 = vmatprep.subr.mxu0 0.0
  %1157 = vmatpush1.xpose.msra.mxu0 0.0
  %1158 = vmatprep.subr.mxu0 0.0
  %1159 = vmatpush1.xpose.msra.mxu0 0.0
  %1160 = vmatprep.subr.mxu0 0.0
  %1161 = vmatpush1.xpose.msra.mxu0 %v1128
  %1162 = vmatprep.subr.mxu0 0.0
  %1163 = vmatpush2.xpose.msra.mxu0 0.0
  %1164 = vmatprep.subr.mxu0 0.0
  %1165 = vmatpush2.xpose.msra.mxu0 0.0
  %1166 = vmatprep.subr.mxu0 0.0
  %1167 = vmatpush2.xpose.msra.mxu0 0.0
  %1168 = vmatprep.subr.mxu0 0.0
  %1169 = vmatpush2.xpose.msra.mxu0 0.0
  %1170 = vmatprep.subr.mxu0 0.0
  %1171 = vmatpush2.xpose.msra.mxu0 0.0
  %1172 = vmatprep.subr.mxu0 0.0
  %1173 = vmatpush2.xpose.msra.mxu0 0.0
  %1174 = vmatprep.subr.mxu0 0.0
  %1175 = vmatpush2.xpose.msra.mxu0 0.0
  %1176 = vmatprep.subr.mxu0 0.0
  %1177 = vmatpush2.xpose.msra.mxu0 0.0
  %1178 = vmatprep.subr.mxu0 0.0
  %1179 = vmatpush2.xpose.msra.mxu0 0.0
  %1180 = vmatprep.subr.mxu0 0.0
  %1181 = vmatpush2.xpose.msra.mxu0 0.0
  %1182 = vmatprep.subr.mxu0 0.0
  %1183 = vmatpush2.xpose.msra.mxu0 0.0
  %1184 = vmatprep.subr.mxu0 0.0
  %1185 = vmatpush2.xpose.msra.mxu0 0.0
  %1186 = vmatprep.subr.mxu0 0.0
  %1187 = vmatpush2.xpose.msra.mxu0 0.0
  %1188 = vmatprep.subr.mxu0 0.0
  %1189 = vmatpush2.xpose.msra.mxu0 0.0
  %1190 = vmatprep.subr.mxu0 0.0
  %1191 = vmatpush2.xpose.msra.mxu0 0.0
  %1192 = vmatprep.subr.mxu0 0.0
  %1193 = vmatpush2.xpose.msra.mxu0 0.0
  %1194 = vmatprep.mubr.f32.mxu0 0.0
  %1195 = vmatmul.mubr.f32.gmra.mxu0 %v1126
  %v1196 = vpop.f32.mrf.mxu0
  %v1197 = vadd.f32 0.0, %v1196
  %v1198 = vpop.f32.mrf.mxu0
  %1199 = vdwg.mxu0
  %v1200 = vsel %vm303, %v1197, -inf
  %1201 = vmax.xlane.f32.xlu0 %v1200
  %v1202 = vpop.xlane.xlu0 %1201
  %v1203 = vsub.f32 %v1197, %v1202
  %v1204 = vmul.f32 %v1203, 1.442695
  %v1205 = vpow.pop %v1204
  %v1206 = vsel %vm303, %v1205, 0.0
  %1207 = vadd.xlane.f32.xlu0 %v1206
  %v1208 = vpop.xlane.xlu0 %1207
  %v1209 = vrcp.pop %v1208
  %v1210 = vmul.f32 %v1205, %v1209
  %1211 = vrot.lane.b32.xlu0 %v1119, 32
  %v1212 = vpop.permute.xlu0 %1211
  %v1214 = vsel %vm317, %v1210, 0
  %v1216 = vsel %vm321, %v1212, 0
  %1218 = vmatprep.subr.mxu0 0.0
  %1219 = vmatpush1.msra.mxu0 0.0
  %1220 = vmatprep.subr.mxu0 0.0
  %1221 = vmatpush1.msra.mxu0 0.0
  %1222 = vmatprep.subr.mxu0 0.0
  %1223 = vmatpush1.msra.mxu0 0.0
  %1224 = vmatprep.subr.mxu0 0.0
  %1225 = vmatpush1.msra.mxu0 0.0
  %1226 = vmatprep.subr.mxu0 0.0
  %1227 = vmatpush1.msra.mxu0 0.0
  %1228 = vmatprep.subr.mxu0 0.0
  %1229 = vmatpush1.msra.mxu0 0.0
  %1230 = vmatprep.subr.mxu0 0.0
  %1231 = vmatpush1.msra.mxu0 0.0
  %1232 = vmatprep.subr.mxu0 0.0
  %1233 = vmatpush1.msra.mxu0 0.0
  %1234 = vmatprep.subr.mxu0 0.0
  %1235 = vmatpush1.msra.mxu0 0.0
  %1236 = vmatprep.subr.mxu0 0.0
  %1237 = vmatpush1.msra.mxu0 0.0
  %1238 = vmatprep.subr.mxu0 0.0
  %1239 = vmatpush1.msra.mxu0 0.0
  %1240 = vmatprep.subr.mxu0 0.0
  %1241 = vmatpush1.msra.mxu0 0.0
  %1242 = vmatprep.subr.mxu0 0.0
  %1243 = vmatpush1.msra.mxu0 0.0
  %1244 = vmatprep.subr.mxu0 0.0
  %1245 = vmatpush1.msra.mxu0 0.0
  %1246 = vmatprep.subr.mxu0 0.0
  %1247 = vmatpush1.msra.mxu0 0.0
  %1248 = vmatprep.subr.mxu0 0.0
  %1249 = vmatpush1.msra.mxu0 %v1216
  %1250 = vmatprep.subr.mxu0 0.0
  %1251 = vmatpush2.msra.mxu0 0.0
  %1252 = vmatprep.subr.mxu0 0.0
  %1253 = vmatpush2.msra.mxu0 0.0
  %1254 = vmatprep.subr.mxu0 0.0
  %1255 = vmatpush2.msra.mxu0 0.0
  %1256 = vmatprep.subr.mxu0 0.0
  %1257 = vmatpush2.msra.mxu0 0.0
  %1258 = vmatprep.subr.mxu0 0.0
  %1259 = vmatpush2.msra.mxu0 0.0
  %1260 = vmatprep.subr.mxu0 0.0
  %1261 = vmatpush2.msra.mxu0 0.0
  %1262 = vmatprep.subr.mxu0 0.0
  %1263 = vmatpush2.msra.mxu0 0.0
  %1264 = vmatprep.subr.mxu0 0.0
  %1265 = vmatpush2.msra.mxu0 0.0
  %1266 = vmatprep.subr.mxu0 0.0
  %1267 = vmatpush2.msra.mxu0 0.0
  %1268 = vmatprep.subr.mxu0 0.0
  %1269 = vmatpush2.msra.mxu0 0.0
  %1270 = vmatprep.subr.mxu0 0.0
  %1271 = vmatpush2.msra.mxu0 0.0
  %1272 = vmatprep.subr.mxu0 0.0
  %1273 = vmatpush2.msra.mxu0 0.0
  %1274 = vmatprep.subr.mxu0 0.0
  %1275 = vmatpush2.msra.mxu0 0.0
  %1276 = vmatprep.subr.mxu0 0.0
  %1277 = vmatpush2.msra.mxu0 0.0
  %1278 = vmatprep.subr.mxu0 0.0
  %1279 = vmatpush2.msra.mxu0 0.0
  %1280 = vmatprep.subr.mxu0 0.0
  %1281 = vmatpush2.msra.mxu0 0.0
  %1282 = vmatprep.mubr.f32.mxu0 0.0
  %1283 = vmatmul.mubr.f32.gmra.mxu0 %v1214
  %v1284 = vpop.f32.mrf.mxu0
  %v1285 = vadd.f32 0.0, %v1284
  %v1286 = vpop.f32.mrf.mxu0
  %1287 = vdwg.mxu0
  %1288 = vrot.lane.b32.xlu0 %v1119, 112
  %v1289 = vpop.permute.xlu0 %1288
  %1290 = vrot.lane.b32.xlu0 %v1119, 64
  %v1291 = vpop.permute.xlu0 %1290
  %v1292 = vsel %vm151, %v1289, 0
  %v1294 = vsel %vm151, %v1291, 0
  %1296 = vmatprep.subr.mxu0 0.0
  %1297 = vmatpush1.xpose.msra.mxu0 0.0
  %1298 = vmatprep.subr.mxu0 0.0
  %1299 = vmatpush1.xpose.msra.mxu0 0.0
  %1300 = vmatprep.subr.mxu0 0.0
  %1301 = vmatpush1.xpose.msra.mxu0 0.0
  %1302 = vmatprep.subr.mxu0 0.0
  %1303 = vmatpush1.xpose.msra.mxu0 0.0
  %1304 = vmatprep.subr.mxu0 0.0
  %1305 = vmatpush1.xpose.msra.mxu0 0.0
  %1306 = vmatprep.subr.mxu0 0.0
  %1307 = vmatpush1.xpose.msra.mxu0 0.0
  %1308 = vmatprep.subr.mxu0 0.0
  %1309 = vmatpush1.xpose.msra.mxu0 0.0
  %1310 = vmatprep.subr.mxu0 0.0
  %1311 = vmatpush1.xpose.msra.mxu0 0.0
  %1312 = vmatprep.subr.mxu0 0.0
  %1313 = vmatpush1.xpose.msra.mxu0 0.0
  %1314 = vmatprep.subr.mxu0 0.0
  %1315 = vmatpush1.xpose.msra.mxu0 0.0
  %1316 = vmatprep.subr.mxu0 0.0
  %1317 = vmatpush1.xpose.msra.mxu0 0.0
  %1318 = vmatprep.subr.mxu0 0.0
  %1319 = vmatpush1.xpose.msra.mxu0 0.0
  %1320 = vmatprep.subr.mxu0 0.0
  %1321 = vmatpush1.xpose.msra.mxu0 0.0
  %1322 = vmatprep.subr.mxu0 0.0
  %1323 = vmatpush1.xpose.msra.mxu0 0.0
  %1324 = vmatprep.subr.mxu0 0.0
  %1325 = vmatpush1.xpose.msra.mxu0 0.0
  %1326 = vmatprep.subr.mxu0 0.0
  %1327 = vmatpush1.xpose.msra.mxu0 %v1294
  %1328 = vmatprep.subr.mxu0 0.0
  %1329 = vmatpush2.xpose.msra.mxu0 0.0
  %1330 = vmatprep.subr.mxu0 0.0
  %1331 = vmatpush2.xpose.msra.mxu0 0.0
  %1332 = vmatprep.subr.mxu0 0.0
  %1333 = vmatpush2.xpose.msra.mxu0 0.0
  %1334 = vmatprep.subr.mxu0 0.0
  %1335 = vmatpush2.xpose.msra.mxu0 0.0
  %1336 = vmatprep.subr.mxu0 0.0
  %1337 = vmatpush2.xpose.msra.mxu0 0.0
  %1338 = vmatprep.subr.mxu0 0.0
  %1339 = vmatpush2.xpose.msra.mxu0 0.0
  %1340 = vmatprep.subr.mxu0 0.0
  %1341 = vmatpush2.xpose.msra.mxu0 0.0
  %1342 = vmatprep.subr.mxu0 0.0
  %1343 = vmatpush2.xpose.msra.mxu0 0.0
  %1344 = vmatprep.subr.mxu0 0.0
  %1345 = vmatpush2.xpose.msra.mxu0 0.0
  %1346 = vmatprep.subr.mxu0 0.0
  %1347 = vmatpush2.xpose.msra.mxu0 0.0
  %1348 = vmatprep.subr.mxu0 0.0
  %1349 = vmatpush2.xpose.msra.mxu0 0.0
  %1350 = vmatprep.subr.mxu0 0.0
  %1351 = vmatpush2.xpose.msra.mxu0 0.0
  %1352 = vmatprep.subr.mxu0 0.0
  %1353 = vmatpush2.xpose.msra.mxu0 0.0
  %1354 = vmatprep.subr.mxu0 0.0
  %1355 = vmatpush2.xpose.msra.mxu0 0.0
  %1356 = vmatprep.subr.mxu0 0.0
  %1357 = vmatpush2.xpose.msra.mxu0 0.0
  %1358 = vmatprep.subr.mxu0 0.0
  %1359 = vmatpush2.xpose.msra.mxu0 0.0
  %1360 = vmatprep.mubr.f32.mxu0 0.0
  %1361 = vmatmul.mubr.f32.gmra.mxu0 %v1292
  %v1362 = vpop.f32.mrf.mxu0
  %v1363 = vadd.f32 0.0, %v1362
  %v1364 = vpop.f32.mrf.mxu0
  %1365 = vdwg.mxu0
  %v1366 = vsel %vm303, %v1363, -inf
  %1367 = vmax.xlane.f32.xlu0 %v1366
  %v1368 = vpop.xlane.xlu0 %1367
  %v1369 = vsub.f32 %v1363, %v1368
  %v1370 = vmul.f32 %v1369, 1.442695
  %v1371 = vpow.pop %v1370
  %v1372 = vsel %vm303, %v1371, 0.0
  %1373 = vadd.xlane.f32.xlu0 %v1372
  %v1374 = vpop.xlane.xlu0 %1373
  %v1375 = vrcp.pop %v1374
  %v1376 = vmul.f32 %v1371, %v1375
  %1377 = vrot.lane.b32.xlu0 %v1119, 16
  %v1378 = vpop.permute.xlu0 %1377
  %v1380 = vsel %vm317, %v1376, 0
  %v1382 = vsel %vm321, %v1378, 0
  %1384 = vmatprep.subr.mxu0 0.0
  %1385 = vmatpush1.msra.mxu0 0.0
  %1386 = vmatprep.subr.mxu0 0.0
  %1387 = vmatpush1.msra.mxu0 0.0
  %1388 = vmatprep.subr.mxu0 0.0
  %1389 = vmatpush1.msra.mxu0 0.0
  %1390 = vmatprep.subr.mxu0 0.0
  %1391 = vmatpush1.msra.mxu0 0.0
  %1392 = vmatprep.subr.mxu0 0.0
  %1393 = vmatpush1.msra.mxu0 0.0
  %1394 = vmatprep.subr.mxu0 0.0
  %1395 = vmatpush1.msra.mxu0 0.0
  %1396 = vmatprep.subr.mxu0 0.0
  %1397 = vmatpush1.msra.mxu0 0.0
  %1398 = vmatprep.subr.mxu0 0.0
  %1399 = vmatpush1.msra.mxu0 0.0
  %1400 = vmatprep.subr.mxu0 0.0
  %1401 = vmatpush1.msra.mxu0 0.0
  %1402 = vmatprep.subr.mxu0 0.0
  %1403 = vmatpush1.msra.mxu0 0.0
  %1404 = vmatprep.subr.mxu0 0.0
  %1405 = vmatpush1.msra.mxu0 0.0
  %1406 = vmatprep.subr.mxu0 0.0
  %1407 = vmatpush1.msra.mxu0 0.0
  %1408 = vmatprep.subr.mxu0 0.0
  %1409 = vmatpush1.msra.mxu0 0.0
  %1410 = vmatprep.subr.mxu0 0.0
  %1411 = vmatpush1.msra.mxu0 0.0
  %1412 = vmatprep.subr.mxu0 0.0
  %1413 = vmatpush1.msra.mxu0 0.0
  %1414 = vmatprep.subr.mxu0 0.0
  %1415 = vmatpush1.msra.mxu0 %v1382
  %1416 = vmatprep.subr.mxu0 0.0
  %1417 = vmatpush2.msra.mxu0 0.0
  %1418 = vmatprep.subr.mxu0 0.0
  %1419 = vmatpush2.msra.mxu0 0.0
  %1420 = vmatprep.subr.mxu0 0.0
  %1421 = vmatpush2.msra.mxu0 0.0
  %1422 = vmatprep.subr.mxu0 0.0
  %1423 = vmatpush2.msra.mxu0 0.0
  %1424 = vmatprep.subr.mxu0 0.0
  %1425 = vmatpush2.msra.mxu0 0.0
  %1426 = vmatprep.subr.mxu0 0.0
  %1427 = vmatpush2.msra.mxu0 0.0
  %1428 = vmatprep.subr.mxu0 0.0
  %1429 = vmatpush2.msra.mxu0 0.0
  %1430 = vmatprep.subr.mxu0 0.0
  %1431 = vmatpush2.msra.mxu0 0.0
  %1432 = vmatprep.subr.mxu0 0.0
  %1433 = vmatpush2.msra.mxu0 0.0
  %1434 = vmatprep.subr.mxu0 0.0
  %1435 = vmatpush2.msra.mxu0 0.0
  %1436 = vmatprep.subr.mxu0 0.0
  %1437 = vmatpush2.msra.mxu0 0.0
  %1438 = vmatprep.subr.mxu0 0.0
  %1439 = vmatpush2.msra.mxu0 0.0
  %1440 = vmatprep.subr.mxu0 0.0
  %1441 = vmatpush2.msra.mxu0 0.0
  %1442 = vmatprep.subr.mxu0 0.0
  %1443 = vmatpush2.msra.mxu0 0.0
  %1444 = vmatprep.subr.mxu0 0.0
  %1445 = vmatpush2.msra.mxu0 0.0
  %1446 = vmatprep.subr.mxu0 0.0
  %1447 = vmatpush2.msra.mxu0 0.0
  %1448 = vmatprep.mubr.f32.mxu0 0.0
  %1449 = vmatmul.mubr.f32.gmra.mxu0 %v1380
  %v1450 = vpop.f32.mrf.mxu0
  %v1451 = vadd.f32 0.0, %v1450
  %v1452 = vpop.f32.mrf.mxu0
  %1453 = vdwg.mxu0
  %1454 = vrot.lane.b32.xlu0 %v1119, 96
  %v1455 = vpop.permute.xlu0 %1454
  %1456 = vrot.lane.b32.xlu0 %v1119, 48
  %v1457 = vpop.permute.xlu0 %1456
  %v1458 = vsel %vm151, %v1455, 0
  %v1460 = vsel %vm151, %v1457, 0
  %1462 = vmatprep.subr.mxu0 0.0
  %1463 = vmatpush1.xpose.msra.mxu0 0.0
  %1464 = vmatprep.subr.mxu0 0.0
  %1465 = vmatpush1.xpose.msra.mxu0 0.0
  %1466 = vmatprep.subr.mxu0 0.0
  %1467 = vmatpush1.xpose.msra.mxu0 0.0
  %1468 = vmatprep.subr.mxu0 0.0
  %1469 = vmatpush1.xpose.msra.mxu0 0.0
  %1470 = vmatprep.subr.mxu0 0.0
  %1471 = vmatpush1.xpose.msra.mxu0 0.0
  %1472 = vmatprep.subr.mxu0 0.0
  %1473 = vmatpush1.xpose.msra.mxu0 0.0
  %1474 = vmatprep.subr.mxu0 0.0
  %1475 = vmatpush1.xpose.msra.mxu0 0.0
  %1476 = vmatprep.subr.mxu0 0.0
  %1477 = vmatpush1.xpose.msra.mxu0 0.0
  %1478 = vmatprep.subr.mxu0 0.0
  %1479 = vmatpush1.xpose.msra.mxu0 0.0
  %1480 = vmatprep.subr.mxu0 0.0
  %1481 = vmatpush1.xpose.msra.mxu0 0.0
  %1482 = vmatprep.subr.mxu0 0.0
  %1483 = vmatpush1.xpose.msra.mxu0 0.0
  %1484 = vmatprep.subr.mxu0 0.0
  %1485 = vmatpush1.xpose.msra.mxu0 0.0
  %1486 = vmatprep.subr.mxu0 0.0
  %1487 = vmatpush1.xpose.msra.mxu0 0.0
  %1488 = vmatprep.subr.mxu0 0.0
  %1489 = vmatpush1.xpose.msra.mxu0 0.0
  %1490 = vmatprep.subr.mxu0 0.0
  %1491 = vmatpush1.xpose.msra.mxu0 0.0
  %1492 = vmatprep.subr.mxu0 0.0
  %1493 = vmatpush1.xpose.msra.mxu0 %v1460
  %1494 = vmatprep.subr.mxu0 0.0
  %1495 = vmatpush2.xpose.msra.mxu0 0.0
  %1496 = vmatprep.subr.mxu0 0.0
  %1497 = vmatpush2.xpose.msra.mxu0 0.0
  %1498 = vmatprep.subr.mxu0 0.0
  %1499 = vmatpush2.xpose.msra.mxu0 0.0
  %1500 = vmatprep.subr.mxu0 0.0
  %1501 = vmatpush2.xpose.msra.mxu0 0.0
  %1502 = vmatprep.subr.mxu0 0.0
  %1503 = vmatpush2.xpose.msra.mxu0 0.0
  %1504 = vmatprep.subr.mxu0 0.0
  %1505 = vmatpush2.xpose.msra.mxu0 0.0
  %1506 = vmatprep.subr.mxu0 0.0
  %1507 = vmatpush2.xpose.msra.mxu0 0.0
  %1508 = vmatprep.subr.mxu0 0.0
  %1509 = vmatpush2.xpose.msra.mxu0 0.0
  %1510 = vmatprep.subr.mxu0 0.0
  %1511 = vmatpush2.xpose.msra.mxu0 0.0
  %1512 = vmatprep.subr.mxu0 0.0
  %1513 = vmatpush2.xpose.msra.mxu0 0.0
  %1514 = vmatprep.subr.mxu0 0.0
  %1515 = vmatpush2.xpose.msra.mxu0 0.0
  %1516 = vmatprep.subr.mxu0 0.0
  %1517 = vmatpush2.xpose.msra.mxu0 0.0
  %1518 = vmatprep.subr.mxu0 0.0
  %1519 = vmatpush2.xpose.msra.mxu0 0.0
  %1520 = vmatprep.subr.mxu0 0.0
  %1521 = vmatpush2.xpose.msra.mxu0 0.0
  %1522 = vmatprep.subr.mxu0 0.0
  %1523 = vmatpush2.xpose.msra.mxu0 0.0
  %1524 = vmatprep.subr.mxu0 0.0
  %1525 = vmatpush2.xpose.msra.mxu0 0.0
  %1526 = vmatprep.mubr.f32.mxu0 0.0
  %1527 = vmatmul.mubr.f32.gmra.mxu0 %v1458
  %v1528 = vpop.f32.mrf.mxu0
  %v1529 = vadd.f32 0.0, %v1528
  %v1530 = vpop.f32.mrf.mxu0
  %1531 = vdwg.mxu0
  %v1532 = vsel %vm303, %v1529, -inf
  %1533 = vmax.xlane.f32.xlu0 %v1532
  %v1534 = vpop.xlane.xlu0 %1533
  %v1535 = vsub.f32 %v1529, %v1534
  %v1536 = vmul.f32 %v1535, 1.442695
  %v1537 = vpow.pop %v1536
  %v1538 = vsel %vm303, %v1537, 0.0
  %1539 = vadd.xlane.f32.xlu0 %v1538
  %v1540 = vpop.xlane.xlu0 %1539
  %v1541 = vrcp.pop %v1540
  %v1542 = vmul.f32 %v1537, %v1541
  %v1544 = vsel %vm317, %v1542, 0
  %v1547 = vsel %vm321, %v1121, 0
  %1549 = vmatprep.subr.mxu0 0.0
  %1550 = vmatpush1.msra.mxu0 0.0
  %1551 = vmatprep.subr.mxu0 0.0
  %1552 = vmatpush1.msra.mxu0 0.0
  %1553 = vmatprep.subr.mxu0 0.0
  %1554 = vmatpush1.msra.mxu0 0.0
  %1555 = vmatprep.subr.mxu0 0.0
  %1556 = vmatpush1.msra.mxu0 0.0
  %1557 = vmatprep.subr.mxu0 0.0
  %1558 = vmatpush1.msra.mxu0 0.0
  %1559 = vmatprep.subr.mxu0 0.0
  %1560 = vmatpush1.msra.mxu0 0.0
  %1561 = vmatprep.subr.mxu0 0.0
  %1562 = vmatpush1.msra.mxu0 0.0
  %1563 = vmatprep.subr.mxu0 0.0
  %1564 = vmatpush1.msra.mxu0 0.0
  %1565 = vmatprep.subr.mxu0 0.0
  %1566 = vmatpush1.msra.mxu0 0.0
  %1567 = vmatprep.subr.mxu0 0.0
  %1568 = vmatpush1.msra.mxu0 0.0
  %1569 = vmatprep.subr.mxu0 0.0
  %1570 = vmatpush1.msra.mxu0 0.0
  %1571 = vmatprep.subr.mxu0 0.0
  %1572 = vmatpush1.msra.mxu0 0.0
  %1573 = vmatprep.subr.mxu0 0.0
  %1574 = vmatpush1.msra.mxu0 0.0
  %1575 = vmatprep.subr.mxu0 0.0
  %1576 = vmatpush1.msra.mxu0 0.0
  %1577 = vmatprep.subr.mxu0 0.0
  %1578 = vmatpush1.msra.mxu0 0.0
  %1579 = vmatprep.subr.mxu0 0.0
  %1580 = vmatpush1.msra.mxu0 %v1547
  %1581 = vmatprep.subr.mxu0 0.0
  %1582 = vmatpush2.msra.mxu0 0.0
  %1583 = vmatprep.subr.mxu0 0.0
  %1584 = vmatpush2.msra.mxu0 0.0
  %1585 = vmatprep.subr.mxu0 0.0
  %1586 = vmatpush2.msra.mxu0 0.0
  %1587 = vmatprep.subr.mxu0 0.0
  %1588 = vmatpush2.msra.mxu0 0.0
  %1589 = vmatprep.subr.mxu0 0.0
  %1590 = vmatpush2.msra.mxu0 0.0
  %1591 = vmatprep.subr.mxu0 0.0
  %1592 = vmatpush2.msra.mxu0 0.0
  %1593 = vmatprep.subr.mxu0 0.0
  %1594 = vmatpush2.msra.mxu0 0.0
  %1595 = vmatprep.subr.mxu0 0.0
  %1596 = vmatpush2.msra.mxu0 0.0
  %1597 = vmatprep.subr.mxu0 0.0
  %1598 = vmatpush2.msra.mxu0 0.0
  %1599 = vmatprep.subr.mxu0 0.0
  %1600 = vmatpush2.msra.mxu0 0.0
  %1601 = vmatprep.subr.mxu0 0.0
  %1602 = vmatpush2.msra.mxu0 0.0
  %1603 = vmatprep.subr.mxu0 0.0
  %1604 = vmatpush2.msra.mxu0 0.0
  %1605 = vmatprep.subr.mxu0 0.0
  %1606 = vmatpush2.msra.mxu0 0.0
  %1607 = vmatprep.subr.mxu0 0.0
  %1608 = vmatpush2.msra.mxu0 0.0
  %1609 = vmatprep.subr.mxu0 0.0
  %1610 = vmatpush2.msra.mxu0 0.0
  %1611 = vmatprep.subr.mxu0 0.0
  %1612 = vmatpush2.msra.mxu0 0.0
  %1613 = vmatprep.mubr.f32.mxu0 0.0
  %1614 = vmatmul.mubr.f32.gmra.mxu0 %v1544
  %v1615 = vpop.f32.mrf.mxu0
  %v1616 = vadd.f32 0.0, %v1615
  %v1617 = vpop.f32.mrf.mxu0
  %1618 = vdwg.mxu0
  %1620 = vrot.lane.b32.xlu0 %v1451, 16
  %v1621 = vpop.permute.xlu0 %1620
  %1624 = vrot.lane.b32.xlu0 %v1616, 32
  %v1625 = vpop.permute.xlu0 %1624
  %v1627 = vsel %vm151, %v1285, %v1621
  %v1628 = vsel %vm29, %v1627, %v1625
  %v1629 = vlaneseq
  %v1630 = vshrl.u32 %v1629, 7
  %v1631 = vsub.s32 4, %v1630
  %v1632 = vrot.slane %v1001, %v1631
  %v1634 = vsel %vm739, %v1628, 0
  %1636 = vmatprep.subr.mxu0 0.0
  %1637 = vmatpush1.msra.mxu0 0.0
  %1638 = vmatprep.subr.mxu0 0.0
  %1639 = vmatpush1.msra.mxu0 0.0
  %1640 = vmatprep.subr.mxu0 0.0
  %1641 = vmatpush1.msra.mxu0 0.0
  %1642 = vmatprep.subr.mxu0 0.0
  %1643 = vmatpush1.msra.mxu0 0.0
  %1644 = vmatprep.subr.mxu0 0.0
  %1645 = vmatpush1.msra.mxu0 0.0
  %1646 = vmatprep.subr.mxu0 0.0
  %1647 = vmatpush1.msra.mxu0 0.0
  %1648 = vmatprep.subr.mxu0 0.0
  %1649 = vmatpush1.msra.mxu0 0.0
  %1650 = vmatprep.subr.mxu0 0.0
  %1651 = vmatpush1.msra.mxu0 0.0
  %1652 = vmatprep.subr.mxu0 0.0
  %1653 = vmatpush1.msra.mxu0 0.0
  %1654 = vmatprep.subr.mxu0 0.0
  %1655 = vmatpush1.msra.mxu0 0.0
  %1656 = vmatprep.subr.mxu0 0.0
  %1657 = vmatpush1.msra.mxu0 %v1015
  %1658 = vmatprep.subr.mxu0 0.0
  %1659 = vmatpush1.msra.mxu0 %v1014
  %1660 = vmatprep.subr.mxu0 0.0
  %1661 = vmatpush1.msra.mxu0 %v1013
  %1662 = vmatprep.subr.mxu0 0.0
  %1663 = vmatpush1.msra.mxu0 %v1012
  %1664 = vmatprep.subr.mxu0 0.0
  %1665 = vmatpush1.msra.mxu0 %v1011
  %1666 = vmatprep.subr.mxu0 0.0
  %1667 = vmatpush1.msra.mxu0 %v1010
  %1668 = vmatprep.subr.mxu0 0.0
  %1669 = vmatpush2.msra.mxu0 0.0
  %1670 = vmatprep.subr.mxu0 0.0
  %1671 = vmatpush2.msra.mxu0 0.0
  %1672 = vmatprep.subr.mxu0 0.0
  %1673 = vmatpush2.msra.mxu0 0.0
  %1674 = vmatprep.subr.mxu0 0.0
  %1675 = vmatpush2.msra.mxu0 0.0
  %1676 = vmatprep.subr.mxu0 0.0
  %1677 = vmatpush2.msra.mxu0 0.0
  %1678 = vmatprep.subr.mxu0 0.0
  %1679 = vmatpush2.msra.mxu0 0.0
  %1680 = vmatprep.subr.mxu0 0.0
  %1681 = vmatpush2.msra.mxu0 0.0
  %1682 = vmatprep.subr.mxu0 0.0
  %1683 = vmatpush2.msra.mxu0 0.0
  %1684 = vmatprep.subr.mxu0 0.0
  %1685 = vmatpush2.msra.mxu0 0.0
  %1686 = vmatprep.subr.mxu0 0.0
  %1687 = vmatpush2.msra.mxu0 0.0
  %1688 = vmatprep.subr.mxu0 0.0
  %1689 = vmatpush2.msra.mxu0 0.0
  %1690 = vmatprep.subr.mxu0 0.0
  %1691 = vmatpush2.msra.mxu0 0.0
  %1692 = vmatprep.subr.mxu0 0.0
  %1693 = vmatpush2.msra.mxu0 0.0
  %1694 = vmatprep.subr.mxu0 0.0
  %1695 = vmatpush2.msra.mxu0 0.0
  %1696 = vmatprep.subr.mxu0 0.0
  %1697 = vmatpush2.msra.mxu0 0.0
  %1698 = vmatprep.subr.mxu0 0.0
  %1699 = vmatpush2.msra.mxu0 0.0
  %1700 = vmatprep.mubr.f32.mxu0 0.0
  %1701 = vmatmul.mubr.f32.gmra.mxu0 %v1634
  %v1702 = vpop.f32.mrf.mxu0
  %v1703 = vadd.f32 %v1632, %v1702
  %v1704 = vpop.f32.mrf.mxu0
  %1705 = vdwg.mxu0
  %v1706 = vadd.f32 %v1703, %v999
  %v1707 = vsel %vm124, %v1706, 0.0
  %1708 = vadd.xlane.f32.xlu0 %v1707
  %v1709 = vpop.xlane.xlu0 %1708
  %v1710 = vmul.f32 %v1709, %v128
  %v1711 = vmul.f32 %v1706, %v1706
  %v1712 = vsel %vm124, %v1711, 0.0
  %1713 = vadd.xlane.f32.xlu0 %v1712
  %v1714 = vpop.xlane.xlu0 %1713
  %v1715 = vmul.f32 %v1714, %v128
  %v1716 = vmul.f32 %v1710, %v1710
  %v1717 = vsub.f32 %v1715, %v1716
  %v1718 = vsub.f32 %v1706, %v1710
  %v1719 = vadd.f32 %v1717, 1e-05
  %v1720 = vrsqrt.pop %v1719
  %v1721 = vmul.f32 %v1718, %v1720
  %v1722 = vlaneseq
  %v1723 = vshrl.u32 %v1722, 7
  %v1724 = vsub.s32 2, %v1723
  %v1725 = vrot.slane %v1001, %v1724
  %v1726 = vmul.f32 %v1721, %v1725
  %v1727 = vlaneseq
  %v1728 = vshrl.u32 %v1727, 7
  %v1729 = vsub.s32 3, %v1728
  %v1730 = vrot.slane %v1001, %v1729
  %v1731 = vadd.f32 %v1726, %v1730
  %v1732 = vlaneseq
  %v1733 = vshrl.u32 %v1732, 7
  %v1734 = vsub.s32 6, %v1733
  %v1735 = vrot.slane %v1001, %v1734
  %v1737 = vsel %vm151, %v1731, 0
  %1739 = vmatprep.subr.mxu0 0.0
  %1740 = vmatpush1.msra.mxu0 0.0
  %1741 = vmatprep.subr.mxu0 0.0
  %1742 = vmatpush1.msra.mxu0 0.0
  %1743 = vmatprep.subr.mxu0 0.0
  %1744 = vmatpush1.msra.mxu0 0.0
  %1745 = vmatprep.subr.mxu0 0.0
  %1746 = vmatpush1.msra.mxu0 0.0
  %1747 = vmatprep.subr.mxu0 0.0
  %1748 = vmatpush1.msra.mxu0 0.0
  %1749 = vmatprep.subr.mxu0 0.0
  %1750 = vmatpush1.msra.mxu0 0.0
  %1751 = vmatprep.subr.mxu0 0.0
  %1752 = vmatpush1.msra.mxu0 0.0
  %1753 = vmatprep.subr.mxu0 0.0
  %1754 = vmatpush1.msra.mxu0 0.0
  %1755 = vmatprep.subr.mxu0 0.0
  %1756 = vmatpush1.msra.mxu0 0.0
  %1757 = vmatprep.subr.mxu0 0.0
  %1758 = vmatpush1.msra.mxu0 0.0
  %1759 = vmatprep.subr.mxu0 0.0
  %1760 = vmatpush1.msra.mxu0 0.0
  %1761 = vmatprep.subr.mxu0 0.0
  %1762 = vmatpush1.msra.mxu0 0.0
  %1763 = vmatprep.subr.mxu0 0.0
  %1764 = vmatpush1.msra.mxu0 0.0
  %1765 = vmatprep.subr.mxu0 0.0
  %1766 = vmatpush1.msra.mxu0 0.0
  %1767 = vmatprep.subr.mxu0 0.0
  %1768 = vmatpush1.msra.mxu0 %v1003
  %1769 = vmatprep.subr.mxu0 0.0
  %1770 = vmatpush1.msra.mxu0 %v1002
  %1771 = vmatprep.subr.mxu0 0.0
  %1772 = vmatpush2.msra.mxu0 0.0
  %1773 = vmatprep.subr.mxu0 0.0
  %1774 = vmatpush2.msra.mxu0 0.0
  %1775 = vmatprep.subr.mxu0 0.0
  %1776 = vmatpush2.msra.mxu0 0.0
  %1777 = vmatprep.subr.mxu0 0.0
  %1778 = vmatpush2.msra.mxu0 0.0
  %1779 = vmatprep.subr.mxu0 0.0
  %1780 = vmatpush2.msra.mxu0 0.0
  %1781 = vmatprep.subr.mxu0 0.0
  %1782 = vmatpush2.msra.mxu0 0.0
  %1783 = vmatprep.subr.mxu0 0.0
  %1784 = vmatpush2.msra.mxu0 0.0
  %1785 = vmatprep.subr.mxu0 0.0
  %1786 = vmatpush2.msra.mxu0 0.0
  %1787 = vmatprep.subr.mxu0 0.0
  %1788 = vmatpush2.msra.mxu0 0.0
  %1789 = vmatprep.subr.mxu0 0.0
  %1790 = vmatpush2.msra.mxu0 0.0
  %1791 = vmatprep.subr.mxu0 0.0
  %1792 = vmatpush2.msra.mxu0 0.0
  %1793 = vmatprep.subr.mxu0 0.0
  %1794 = vmatpush2.msra.mxu0 0.0
  %1795 = vmatprep.subr.mxu0 0.0
  %1796 = vmatpush2.msra.mxu0 0.0
  %1797 = vmatprep.subr.mxu0 0.0
  %1798 = vmatpush2.msra.mxu0 0.0
  %1799 = vmatprep.subr.mxu0 0.0
  %1800 = vmatpush2.msra.mxu0 0.0
  %1801 = vmatprep.subr.mxu0 0.0
  %1802 = vmatpush2.msra.mxu0 0.0
  %1803 = vmatprep.mubr.f32.mxu0 0.0
  %1804 = vmatmul.mubr.f32.gmra.mxu0 %v1737
  %v1805 = vpop.f32.mrf.mxu0
  %v1806 = vadd.f32 %v1735, %v1805
  %v1807 = vpop.f32.mrf.mxu0
  %1808 = vdwg.mxu0
  %v1809 = vmul.f32 %v1806, 0.5
  %v1810 = vmul.f32 %v1806, 0.70710677
  %v1811 = verf.f32.pop %v1810
  %v1812 = vadd.f32 %v1811, 1.0
  %v1813 = vmul.f32 %v1809, %v1812
  %v1814 = vlaneseq
  %v1815 = vshrl.u32 %v1814, 7
  %v1816 = vsub.s32 5, %v1815
  %v1817 = vrot.slane %v1001, %v1816
  %v1819 = vsel %vm925, %v1813, 0
  %1821 = vmatprep.subr.mxu0 0.0
  %1822 = vmatpush1.msra.mxu0 0.0
  %1823 = vmatprep.subr.mxu0 0.0
  %1824 = vmatpush1.msra.mxu0 0.0
  %1825 = vmatprep.subr.mxu0 0.0
  %1826 = vmatpush1.msra.mxu0 0.0
  %1827 = vmatprep.subr.mxu0 0.0
  %1828 = vmatpush1.msra.mxu0 0.0
  %1829 = vmatprep.subr.mxu0 0.0
  %1830 = vmatpush1.msra.mxu0 0.0
  %1831 = vmatprep.subr.mxu0 0.0
  %1832 = vmatpush1.msra.mxu0 0.0
  %1833 = vmatprep.subr.mxu0 0.0
  %1834 = vmatpush1.msra.mxu0 0.0
  %1835 = vmatprep.subr.mxu0 0.0
  %1836 = vmatpush1.msra.mxu0 0.0
  %1837 = vmatprep.subr.mxu0 0.0
  %1838 = vmatpush1.msra.mxu0 %v1023
  %1839 = vmatprep.subr.mxu0 0.0
  %1840 = vmatpush1.msra.mxu0 %v1022
  %1841 = vmatprep.subr.mxu0 0.0
  %1842 = vmatpush1.msra.mxu0 %v1021
  %1843 = vmatprep.subr.mxu0 0.0
  %1844 = vmatpush1.msra.mxu0 %v1020
  %1845 = vmatprep.subr.mxu0 0.0
  %1846 = vmatpush1.msra.mxu0 %v1019
  %1847 = vmatprep.subr.mxu0 0.0
  %1848 = vmatpush1.msra.mxu0 %v1018
  %1849 = vmatprep.subr.mxu0 0.0
  %1850 = vmatpush1.msra.mxu0 %v1017
  %1851 = vmatprep.subr.mxu0 0.0
  %1852 = vmatpush1.msra.mxu0 %v1016
  %1853 = vmatprep.subr.mxu0 0.0
  %1854 = vmatpush2.msra.mxu0 0.0
  %1855 = vmatprep.subr.mxu0 0.0
  %1856 = vmatpush2.msra.mxu0 0.0
  %1857 = vmatprep.subr.mxu0 0.0
  %1858 = vmatpush2.msra.mxu0 0.0
  %1859 = vmatprep.subr.mxu0 0.0
  %1860 = vmatpush2.msra.mxu0 0.0
  %1861 = vmatprep.subr.mxu0 0.0
  %1862 = vmatpush2.msra.mxu0 0.0
  %1863 = vmatprep.subr.mxu0 0.0
  %1864 = vmatpush2.msra.mxu0 0.0
  %1865 = vmatprep.subr.mxu0 0.0
  %1866 = vmatpush2.msra.mxu0 0.0
  %1867 = vmatprep.subr.mxu0 0.0
  %1868 = vmatpush2.msra.mxu0 0.0
  %1869 = vmatprep.subr.mxu0 0.0
  %1870 = vmatpush2.msra.mxu0 0.0
  %1871 = vmatprep.subr.mxu0 0.0
  %1872 = vmatpush2.msra.mxu0 0.0
  %1873 = vmatprep.subr.mxu0 0.0
  %1874 = vmatpush2.msra.mxu0 0.0
  %1875 = vmatprep.subr.mxu0 0.0
  %1876 = vmatpush2.msra.mxu0 0.0
  %1877 = vmatprep.subr.mxu0 0.0
  %1878 = vmatpush2.msra.mxu0 0.0
  %1879 = vmatprep.subr.mxu0 0.0
  %1880 = vmatpush2.msra.mxu0 0.0
  %1881 = vmatprep.subr.mxu0 0.0
  %1882 = vmatpush2.msra.mxu0 0.0
  %1883 = vmatprep.subr.mxu0 0.0
  %1884 = vmatpush2.msra.mxu0 0.0
  %1885 = vmatprep.mubr.f32.mxu0 0.0
  %1886 = vmatmul.mubr.f32.gmra.mxu0 %v1819
  %v1887 = vpop.f32.mrf.mxu0
  %v1888 = vadd.f32 %v1817, %v1887
  %v1889 = vpop.f32.mrf.mxu0
  %1890 = vdwg.mxu0
  %v1891 = vadd.f32 %v1888, %v1706
  %v1892 = vlaneseq
  %v1893 = vshrl.u32 %v1892, 7
  %v1894 = vsub.s32 0, %v1893
  %v1895 = vrot.slane %v27, %v1894
  %v1897 = vsel %vm151, %v1891, 0
  %1899 = vmatprep.subr.mxu0 0.0
  %1900 = vmatpush1.msra.mxu0 0.0
  %1901 = vmatprep.subr.mxu0 0.0
  %1902 = vmatpush1.msra.mxu0 0.0
  %1903 = vmatprep.subr.mxu0 0.0
  %1904 = vmatpush1.msra.mxu0 0.0
  %1905 = vmatprep.subr.mxu0 0.0
  %1906 = vmatpush1.msra.mxu0 0.0
  %1907 = vmatprep.subr.mxu0 0.0
  %1908 = vmatpush1.msra.mxu0 0.0
  %1909 = vmatprep.subr.mxu0 0.0
  %1910 = vmatpush1.msra.mxu0 0.0
  %1911 = vmatprep.subr.mxu0 0.0
  %1912 = vmatpush1.msra.mxu0 0.0
  %1913 = vmatprep.subr.mxu0 0.0
  %1914 = vmatpush1.msra.mxu0 0.0
  %1915 = vmatprep.subr.mxu0 0.0
  %1916 = vmatpush1.msra.mxu0 0.0
  %1917 = vmatprep.subr.mxu0 0.0
  %1918 = vmatpush1.msra.mxu0 0.0
  %1919 = vmatprep.subr.mxu0 0.0
  %1920 = vmatpush1.msra.mxu0 0.0
  %1921 = vmatprep.subr.mxu0 0.0
  %1922 = vmatpush1.msra.mxu0 0.0
  %1923 = vmatprep.subr.mxu0 0.0
  %1924 = vmatpush1.msra.mxu0 0.0
  %1925 = vmatprep.subr.mxu0 0.0
  %1926 = vmatpush1.msra.mxu0 0.0
  %1927 = vmatprep.subr.mxu0 0.0
  %1928 = vmatpush1.msra.mxu0 %v25
  %1929 = vmatprep.subr.mxu0 0.0
  %1930 = vmatpush1.msra.mxu0 %v24
  %1931 = vmatprep.subr.mxu0 0.0
  %1932 = vmatpush2.msra.mxu0 0.0
  %1933 = vmatprep.subr.mxu0 0.0
  %1934 = vmatpush2.msra.mxu0 0.0
  %1935 = vmatprep.subr.mxu0 0.0
  %1936 = vmatpush2.msra.mxu0 0.0
  %1937 = vmatprep.subr.mxu0 0.0
  %1938 = vmatpush2.msra.mxu0 0.0
  %1939 = vmatprep.subr.mxu0 0.0
  %1940 = vmatpush2.msra.mxu0 0.0
  %1941 = vmatprep.subr.mxu0 0.0
  %1942 = vmatpush2.msra.mxu0 0.0
  %1943 = vmatprep.subr.mxu0 0.0
  %1944 = vmatpush2.msra.mxu0 0.0
  %1945 = vmatprep.subr.mxu0 0.0
  %1946 = vmatpush2.msra.mxu0 0.0
  %1947 = vmatprep.subr.mxu0 0.0
  %1948 = vmatpush2.msra.mxu0 0.0
  %1949 = vmatprep.subr.mxu0 0.0
  %1950 = vmatpush2.msra.mxu0 0.0
  %1951 = vmatprep.subr.mxu0 0.0
  %1952 = vmatpush2.msra.mxu0 0.0
  %1953 = vmatprep.subr.mxu0 0.0
  %1954 = vmatpush2.msra.mxu0 0.0
  %1955 = vmatprep.subr.mxu0 0.0
  %1956 = vmatpush2.msra.mxu0 0.0
  %1957 = vmatprep.subr.mxu0 0.0
  %1958 = vmatpush2.msra.mxu0 0.0
  %1959 = vmatprep.subr.mxu0 0.0
  %1960 = vmatpush2.msra.mxu0 0.0
  %1961 = vmatprep.subr.mxu0 0.0
  %1962 = vmatpush2.msra.mxu0 0.0
  %1963 = vmatprep.mubr.f32.mxu0 0.0
  %1964 = vmatmul.mubr.f32.gmra.mxu0 %v1897
  %v1965 = vpop.f32.mrf.mxu0
  %v1966 = vadd.f32 %v1895, %v1965
  %v1967 = vpop.f32.mrf.mxu0
  %1968 = vdwg.mxu0
  %vm1969 = vcmask 256000
  %1970 = vst.msk [vmem:[%s5] sm:$0x7] %vm1969, %v1966
  // Predicated region
  $region22: #{transformer_structure_forward.1} parent=0 // pred_check
    _
  $region23: #{transformer_structure_forward.1} parent=0 // pred_check_branch
    %1972 = sbr.rel (0) target = $region25
  $region24: #{transformer_structure_forward.1} parent=0 // pred_region
    _
  $region25: #{transformer_structure_forward.1} parent=0 // pred_fallthru
    _
  // Predicated region
  $region26: #{transformer_structure_forward.1} parent=0 // pred_check
    _
  $region27: #{transformer_structure_forward.1} parent=0 // pred_check_branch
    %1974 = sbr.rel (0) target = $region29
  $region28: #{transformer_structure_forward.1} parent=0 // pred_region
    _
  $region29: #{transformer_structure_forward.1} parent=0 // pred_fallthru
    _

</llo_original>
